<compile_context>
chip_gen: v7x
topology: tpu7x:2x2x1
jax: 0.10.0
libtpu: 0.0.40
codegen_flags: <defaults>
</compile_context>

<pallas_src>
import numpy as np
import jax
import jax.numpy as jnp
from jax import lax
from jax.experimental import pallas as pl
from jax.experimental.pallas import tpu as pltpu


# --------------------------- small static helpers ----------------------------
def _largest_divisor(n, target):
    """Largest divisor of n that is <= target and a multiple of 8 (else n)."""
    if n <= target:
        return n
    for t in range(min(n, target), 7, -1):
        if n % t == 0 and t % 8 == 0:
            return t
    return n


def _pick_q_tile(hw, max_rows, target=512):
    """VMEM-aware query-tile pick: largest divisor of hw that is a multiple of 8
    and fits both the static target and the per-row VMEM budget."""
    cap = max(64, min(target, (max(max_rows, 64) // 8) * 8))
    if hw <= cap:
        return hw
    for t in range(min(hw, cap), 7, -1):
        if hw % t == 0 and t % 8 == 0:
            return t
    return hw


def _spec(shape, index_map, bufs=None):
    """BlockSpec with optional explicit buffer count (falls back gracefully)."""
    if bufs is not None and hasattr(pl, "Buffered"):
        try:
            return pl.BlockSpec(shape, index_map, pipeline_mode=pl.Buffered(bufs))
        except TypeError:
            pass
    return pl.BlockSpec(shape, index_map)


# ------------------------------- the kernel ----------------------------------
def _make_kernel(HW, HW4, C, Cd, C2, TQ, CH, use_bf16_exp):
    """Kernel closure with all static sizes baked in."""
    n_chunks = HW4 // CH

    def kernel(xw_ref, wq_ref, wk_ref, wv_ref, wo_ref, gamma_ref, o_ref,
               k_sc, v_sc):
        # xw_ref   : (1, HW, C)  f32, window-major pixel order (constant over t)
        # wq_ref   : (C, Cd)     bf16   query 1x1-conv weight (transposed)
        # wk_ref   : (C, Cd)     bf16   key   1x1-conv weight (transposed)
        # wv_ref   : (C, C2)     bf16   value 1x1-conv weight (transposed)
        # wo_ref   : (C2, C)     bf16   out   1x1-conv weight (transposed)
        # gamma_ref: (1, 1)      f32 in SMEM
        # o_ref    : (1, TQ, C)  f32 output tile
        # k_sc/v_sc: bf16 VMEM scratch for the pooled K/V (persist across t)
        t = pl.program_id(1)
        f32 = jnp.float32
        bf16 = jnp.bfloat16

        # ---- once per batch element: K/V = 1x1 conv THEN 2x2/stride-2 pool ----
        # Chunked over pooled rows so the live f32 temporaries stay bounded.
        @pl.when(t == 0)
        def _():
            def kv_chunk(c, carry):
                j0 = pl.multiple_of(c * CH, CH)
                k_max = None
                v_max = None
                # the 4 pool phases are contiguous sublane blocks of size HW4
                for p in range(4):
                    xs = xw_ref[0, pl.ds(p * HW4 + j0, CH), :].astype(bf16)
                    pk = jnp.dot(xs, wk_ref[...], preferred_element_type=f32)
                    pv = jnp.dot(xs, wv_ref[...], preferred_element_type=f32)
                    k_max = pk if k_max is None else jnp.maximum(k_max, pk)
                    v_max = pv if v_max is None else jnp.maximum(v_max, pv)
                k_sc[pl.ds(j0, CH), :] = k_max.astype(bf16)
                v_sc[pl.ds(j0, CH), :] = v_max.astype(bf16)
                return carry

            lax.fori_loop(0, n_chunks, kv_chunk, 0)

        # ---- per query tile: Q projection + attention + out proj + residual ----
        row0 = pl.multiple_of(t * TQ, TQ)
        x_tile = xw_ref[0, pl.ds(row0, TQ), :]                     # (TQ, C) f32
        q = jnp.dot(x_tile.astype(bf16), wq_ref[...],
                    preferred_element_type=f32).astype(bf16)       # (TQ, Cd)
        k = k_sc[...]                                              # (HW4, Cd)
        v = v_sc[...]                                              # (HW4, C2)

        qk = lax.dot_general(q, k, (((1,), (1,)), ((), ())),
                             preferred_element_type=f32)           # (TQ, HW4)
        m = jnp.max(qk, axis=-1, keepdims=True)
        if use_bf16_exp:
            # v6e/v7x: bf16 EUP path halves transcendental load & temporaries
            e = jnp.exp((qk - m).astype(bf16))                     # (TQ, HW4) bf16
            row_sum = jnp.sum(e, axis=-1, keepdims=True, dtype=f32)
        else:
            ef = jnp.exp(qk - m)                                   # f32 EUP (v5e)
            row_sum = jnp.sum(ef, axis=-1, keepdims=True)
            e = ef.astype(bf16)

        # PV matmul on un-normalized exponentials; normalize AFTER (TQ*C2 muls)
        o = jnp.dot(e, v, preferred_element_type=f32)              # (TQ, C2)
        o = o * pl.reciprocal(row_sum, approx=True)
        ao = jnp.dot(o.astype(bf16), wo_ref[...],
                     preferred_element_type=f32)                   # (TQ, C)

        gamma = gamma_ref[0, 0]
        # residual uses the exact f32 x_tile (do not cast x for the add)
        o_ref[0] = (gamma * ao + x_tile).astype(o_ref.dtype)

    return kernel


# ------------------------------- the wrapper ----------------------------------
def self_attention(x_nchw, wq, wk, wv, wo, gamma, *, q_tile=None):
    """Pallas implementation of SelfAttention.forward.  x_nchw: (B, C, H, W)."""
    B, C, H, W = x_nchw.shape
    assert H % 2 == 0 and W % 2 == 0, "2x2/stride-2 max-pool needs even H, W"
    Cd = wq.shape[0]          # C // divider
    C2 = wv.shape[0]          # C // 2
    HW = H * W
    HW4 = HW // 4

    # ---- trace-time hardware query (generation-aware tuning) ----
    try:
        vmem_cap = int(pltpu.get_tpu_info().vmem_capacity_bytes)
    except Exception:
        vmem_cap = 64 * 1024 * 1024        # conservative (v7x-sized) fallback
    try:
        kind = jax.devices()[0].device_kind.lower()
    except Exception:
        kind = ""
    old_gen = any(s in kind for s in ("v2", "v3", "v4", "v5"))
    scoped_default = (16 << 20) if old_gen else (32 << 20)
    use_bf16_exp = not old_gen             # v6e/v7x EUP has a bf16 path

    # K/V projection chunk size (pooled rows per fori_loop step)
    CH = _largest_divisor(HW4, 512)

    # fixed (TQ-independent) VMEM footprint
    wbytes = (2 * C * Cd + C * C2 + C2 * C) * 2          # bf16 weights, 1 buffer
    fixed = (HW * C * 4                                  # pixel slab, 1 buffer
             + (HW4 * Cd + HW4 * C2) * 2                 # pooled K/V scratch
             + 4 * CH * (Cd + C2) * 4 + CH * C * 2       # step-0 chunk temps
             + wbytes)
    budget = max(vmem_cap - (16 << 20) - fixed, 4 << 20)
    # per-query-row cost: ~3 live f32 (row, HW4) softmax temps + in/out rows
    per_row = 3 * HW4 * 4 + 3 * C * 4 + (Cd + C2) * 4

    TQ = q_tile if q_tile is not None else _pick_q_tile(HW, budget // per_row)
    assert HW % TQ == 0
    n_q_tiles = HW // TQ

    # footprint estimate including TQ-dependent pieces (step-0 temps included)
    est = (fixed
           + 2 * TQ * C * 4                              # output tile (2 bufs)
           + 3 * TQ * HW4 * 4                            # softmax temporaries
           + TQ * (Cd + C2 + C) * 4)                     # q / o / ao temps
    est_double_slab = est + HW * C * 4
    slab_bufs = None                                     # default double-buffer
    if est_double_slab > int(0.6 * vmem_cap):
        slab_bufs = 1                                    # reclaim one slab copy
        vmem_est = est
    else:
        vmem_est = est_double_slab

    cp_kwargs = dict(dimension_semantics=("parallel", "arbitrary"))
    if vmem_est > scoped_default:
        limit = min(int(vmem_est * 1.25) + (2 << 20), vmem_cap - (8 << 20))
        if limit > scoped_default:
            cp_kwargs["vmem_limit_bytes"] = limit

    # ---- window-major pixel order ----
    # idx = (2*dh + dw) * HW4 + (h' * (W//2) + w')
    x_nhwc = jnp.transpose(x_nchw, (0, 2, 3, 1))
    xw = x_nhwc.reshape(B, H // 2, 2, W // 2, 2, C)
    xw = jnp.transpose(xw, (0, 2, 4, 1, 3, 5)).reshape(B, HW, C).astype(jnp.float32)

    # transposed, bf16 weights for the MXU fast path (kept separate: no lane slices)
    wq_t = wq.T.astype(jnp.bfloat16)          # (C, Cd)
    wk_t = wk.T.astype(jnp.bfloat16)          # (C, Cd)
    wv_t = wv.T.astype(jnp.bfloat16)          # (C, C2)
    wo_t = wo.T.astype(jnp.bfloat16)          # (C2, C)
    gamma_arr = jnp.reshape(jnp.asarray(gamma, jnp.float32), (1, 1))

    kernel = _make_kernel(HW, HW4, C, Cd, C2, TQ, CH, use_bf16_exp)

    # advisory cost estimate for the XLA scheduler
    flops = 2 * B * (HW * C * Cd + HW * C * (Cd + C2)
                     + HW * HW4 * Cd + HW * HW4 * C2 + HW * C2 * C)
    cost = pl.CostEstimate(
        flops=int(flops),
        transcendentals=int(B * HW * HW4),
        bytes_accessed=int(2 * B * HW * C * 4
                           + (2 * C * Cd + C * C2 + C2 * C) * 2),
    )

    out = pl.pallas_call(
        kernel,
        out_shape=jax.ShapeDtypeStruct((B, HW, C), jnp.float32),
        grid=(B, n_q_tiles),
        in_specs=[
            _spec((1, HW, C), lambda b, t: (b, 0, 0), bufs=slab_bufs),  # pixels
            _spec((C, Cd), lambda b, t: (0, 0), bufs=1),                # Wq^T
            _spec((C, Cd), lambda b, t: (0, 0), bufs=1),                # Wk^T
            _spec((C, C2), lambda b, t: (0, 0), bufs=1),                # Wv^T
            _spec((C2, C), lambda b, t: (0, 0), bufs=1),                # Wo^T
            pl.BlockSpec(memory_space=pltpu.MemorySpace.SMEM),          # gamma
        ],
        out_specs=pl.BlockSpec((1, TQ, C), lambda b, t: (b, t, 0)),
        scratch_shapes=[
            pltpu.VMEM((HW4, Cd), jnp.bfloat16),   # pooled K
            pltpu.VMEM((HW4, C2), jnp.bfloat16),   # pooled V
        ],
        compiler_params=pltpu.CompilerParams(**cp_kwargs),
        cost_estimate=cost,
    )(xw, wq_t, wk_t, wv_t, wo_t, gamma_arr)

    # undo the window-major permutation and return to NCHW
    out = out.reshape(B, 2, 2, H // 2, W // 2, C)
    out = jnp.transpose(out, (0, 3, 1, 4, 2, 5)).reshape(B, H, W, C)
    return jnp.transpose(out, (0, 3, 1, 2))


# ---------------- pure-JAX reference (mirrors the PyTorch forward) -----------
def reference(x, wq, wk, wv, wo, gamma):
    B, C, H, W = x.shape
    Cd = wq.shape[0]
    C2 = wv.shape[0]

    def conv1x1(w, t):
        return jnp.einsum('oc,bchw->bohw', w, t)

    def maxpool2(t):
        b, ch, h, w = t.shape
        return jnp.max(t.reshape(b, ch, h // 2, 2, w // 2, 2), axis=(3, 5))

    q = conv1x1(wq, x).reshape(B, Cd, H * W).transpose(0, 2, 1)      # (B,HW,Cd)
    k = maxpool2(conv1x1(wk, x)).reshape(B, Cd, H * W // 4)          # (B,Cd,HW/4)
    v = maxpool2(conv1x1(wv, x)).reshape(B, C2, H * W // 4)          # (B,C2,HW/4)
    qk = jnp.einsum('bic,bcj->bij', q, k)                            # (B,HW,HW/4)
    attn = jax.nn.softmax(qk, axis=2)
    o = jnp.einsum('bcj,bij->bci', v, attn)                          # (B,C2,HW)
    o = o.reshape(B, C2, H, W)
    out = conv1x1(wo, o)
    return gamma * out + x


# ---------------- deterministic parameter init (mimics spectral_norm) --------
def xavier_sn(key, out_ch, in_ch):
    # xavier_uniform_ with gain sqrt(2) on a 1x1 conv weight ...
    gain = 2.0 ** 0.5
    bound = gain * (6.0 / (in_ch + out_ch)) ** 0.5
    w = jax.random.uniform(key, (out_ch, in_ch), jnp.float32, -bound, bound)
    # ... then spectral normalization: divide by the top singular value.
    # TODO(synk): PyTorch estimates sigma with one power iteration from a random
    # vector; we use the exact top singular value (deterministic equivalent).
    sigma = np.linalg.norm(np.asarray(w), 2)
    return w / jnp.float32(sigma)


if __name__ == "__main__":
    B, C, H, W = 2, 16, 16, 16
    DIVIDER = 8

    key = jax.random.PRNGKey(0)
    kx, k1, k2, k3, k4 = jax.random.split(key, 5)
    x = jax.random.normal(kx, (B, C, H, W), jnp.float32)

    wq = xavier_sn(k1, C // DIVIDER, C)   # query 1x1 conv
    wk = xavier_sn(k2, C // DIVIDER, C)   # key   1x1 conv
    wv = xavier_sn(k3, C // 2, C)         # value 1x1 conv
    wo = xavier_sn(k4, C, C // 2)         # out   1x1 conv

    # gamma = 0 (module initialization): result must equal the input
    gamma0 = jnp.float32(0.0)
    out0 = jax.block_until_ready(self_attention(x, wq, wk, wv, wo, gamma0))
    ref0 = reference(x, wq, wk, wv, wo, gamma0)
    assert out0.shape == (B, C, H, W)
    assert jnp.allclose(out0, ref0, rtol=2e-2, atol=2e-2)

    # nonzero gamma with multiple query tiles (exercises the chunked K/V
    # projection reuse across the "arbitrary" tile axis and the per-tile Q path).
    # Tolerance is relaxed vs. 1e-3 because of the bf16 MXU/EUP paths.
    gamma1 = jnp.float32(0.7)
    out1 = jax.block_until_ready(
        self_attention(x, wq, wk, wv, wo, gamma1, q_tile=64))
    ref1 = reference(x, wq, wk, wv, wo, gamma1)
    assert jnp.allclose(out1, ref1, rtol=2e-2, atol=2e-2)

    print("KERNEL_OK")
</pallas_src>

<mosaic_0001>
module attributes {stable_mosaic.version = 11 : i64} {
  func.func @kernel(%arg0: i32, %arg1: i32, %arg2: memref<1x256x16xf32, #tpu.memory_space<vmem>>, %arg3: memref<16x2xbf16, #tpu.memory_space<vmem>>, %arg4: memref<16x2xbf16, #tpu.memory_space<vmem>>, %arg5: memref<16x8xbf16, #tpu.memory_space<vmem>>, %arg6: memref<8x16xbf16, #tpu.memory_space<vmem>>, %arg7: memref<1x1xf32, #tpu.memory_space<smem>>, %arg8: memref<1x256x16xf32, #tpu.memory_space<vmem>>, %arg9: memref<64x2xbf16, #tpu.memory_space<vmem>>, %arg10: memref<64x8xbf16, #tpu.memory_space<vmem>>) attributes {dimension_semantics = [#tpu.dimension_semantics<parallel>, #tpu.dimension_semantics<arbitrary>], iteration_bounds = array<i64: 2, 1>, scalar_prefetch = 0 : i64, scratch_operands = 2 : i64, tpu.core_type = #tpu.core_type<tc>, window_params = [{transform_indices = @transform_0, window_bounds = array<i64: 1, 256, 16>}, {pipeline_mode = #tpu.pipeline_mode<synchronous>, transform_indices = @transform_1, window_bounds = array<i64: 16, 2>}, {pipeline_mode = #tpu.pipeline_mode<synchronous>, transform_indices = @transform_2, window_bounds = array<i64: 16, 2>}, {pipeline_mode = #tpu.pipeline_mode<synchronous>, transform_indices = @transform_3, window_bounds = array<i64: 16, 8>}, {pipeline_mode = #tpu.pipeline_mode<synchronous>, transform_indices = @transform_4, window_bounds = array<i64: 8, 16>}, {transform_indices = @transform_5, window_bounds = array<i64: 1, 1>}, {transform_indices = @transform_6, window_bounds = array<i64: 1, 256, 16>}]} {
    %c0_i32 = arith.constant 0 : i32
    %0 = arith.cmpi eq, %arg1, %c0_i32 : i32
    %1 = arith.extui %0 : i1 to i32
    %c0_i32_0 = arith.constant 0 : i32
    %2 = arith.cmpi ne, %1, %c0_i32_0 : i32
    scf.if %2 {
      %c0_i32_20 = arith.constant 0 : i32
      %c64_i32 = arith.constant 64 : i32
      %38 = arith.muli %c0_i32_20, %c64_i32 : i32
      %39 = tpu.assume_multiple %38, 64 : i32
      %c0_i32_21 = arith.constant 0 : i32
      %40 = arith.addi %c0_i32_21, %39 : i32
      %c0_22 = arith.constant 0 : index
      %41 = arith.index_cast %40 : i32 to index
      %c0_23 = arith.constant 0 : index
      %42 = vector.load %arg2[%c0_22, %41, %c0_23] : memref<1x256x16xf32, #tpu.memory_space<vmem>>, vector<1x64x16xf32>
      %43 = vector.shape_cast %42 : vector<1x64x16xf32> to vector<64x16xf32>
      %44 = arith.truncf %43 : vector<64x16xf32> to vector<64x16xbf16>
      %c0_24 = arith.constant 0 : index
      %c0_25 = arith.constant 0 : index
      %45 = vector.load %arg4[%c0_24, %c0_25] : memref<16x2xbf16, #tpu.memory_space<vmem>>, vector<16x2xbf16>
      %cst_26 = arith.constant dense<0.000000e+00> : vector<64x2xf32>
      %46 = tpu.matmul %44, %45, %cst_26 {dimension_numbers = #tpu.dot_dimension_numbers<[1], [0], [0], [1], [0, 0, 1, 1], [], []>} : vector<64x16xbf16>, vector<16x2xbf16>, vector<64x2xf32> -> vector<64x2xf32>
      %c0_27 = arith.constant 0 : index
      %c0_28 = arith.constant 0 : index
      %47 = vector.load %arg5[%c0_27, %c0_28] : memref<16x8xbf16, #tpu.memory_space<vmem>>, vector<16x8xbf16>
      %cst_29 = arith.constant dense<0.000000e+00> : vector<64x8xf32>
      %48 = tpu.matmul %44, %47, %cst_29 {dimension_numbers = #tpu.dot_dimension_numbers<[1], [0], [0], [1], [0, 0, 1, 1], [], []>} : vector<64x16xbf16>, vector<16x8xbf16>, vector<64x8xf32> -> vector<64x8xf32>
      %c64_i32_30 = arith.constant 64 : i32
      %49 = arith.addi %c64_i32_30, %39 : i32
      %c0_31 = arith.constant 0 : index
      %50 = arith.index_cast %49 : i32 to index
      %c0_32 = arith.constant 0 : index
      %51 = vector.load %arg2[%c0_31, %50, %c0_32] : memref<1x256x16xf32, #tpu.memory_space<vmem>>, vector<1x64x16xf32>
      %52 = vector.shape_cast %51 : vector<1x64x16xf32> to vector<64x16xf32>
      %53 = arith.truncf %52 : vector<64x16xf32> to vector<64x16xbf16>
      %c0_33 = arith.constant 0 : index
      %c0_34 = arith.constant 0 : index
      %54 = vector.load %arg4[%c0_33, %c0_34] : memref<16x2xbf16, #tpu.memory_space<vmem>>, vector<16x2xbf16>
      %cst_35 = arith.constant dense<0.000000e+00> : vector<64x2xf32>
      %55 = tpu.matmul %53, %54, %cst_35 {dimension_numbers = #tpu.dot_dimension_numbers<[1], [0], [0], [1], [0, 0, 1, 1], [], []>} : vector<64x16xbf16>, vector<16x2xbf16>, vector<64x2xf32> -> vector<64x2xf32>
      %c0_36 = arith.constant 0 : index
      %c0_37 = arith.constant 0 : index
      %56 = vector.load %arg5[%c0_36, %c0_37] : memref<16x8xbf16, #tpu.memory_space<vmem>>, vector<16x8xbf16>
      %cst_38 = arith.constant dense<0.000000e+00> : vector<64x8xf32>
      %57 = tpu.matmul %53, %56, %cst_38 {dimension_numbers = #tpu.dot_dimension_numbers<[1], [0], [0], [1], [0, 0, 1, 1], [], []>} : vector<64x16xbf16>, vector<16x8xbf16>, vector<64x8xf32> -> vector<64x8xf32>
      %58 = arith.maximumf %46, %55 : vector<64x2xf32>
      %59 = arith.maximumf %48, %57 : vector<64x8xf32>
      %c128_i32 = arith.constant 128 : i32
      %60 = arith.addi %c128_i32, %39 : i32
      %c0_39 = arith.constant 0 : index
      %61 = arith.index_cast %60 : i32 to index
      %c0_40 = arith.constant 0 : index
      %62 = vector.load %arg2[%c0_39, %61, %c0_40] : memref<1x256x16xf32, #tpu.memory_space<vmem>>, vector<1x64x16xf32>
      %63 = vector.shape_cast %62 : vector<1x64x16xf32> to vector<64x16xf32>
      %64 = arith.truncf %63 : vector<64x16xf32> to vector<64x16xbf16>
      %c0_41 = arith.constant 0 : index
      %c0_42 = arith.constant 0 : index
      %65 = vector.load %arg4[%c0_41, %c0_42] : memref<16x2xbf16, #tpu.memory_space<vmem>>, vector<16x2xbf16>
      %cst_43 = arith.constant dense<0.000000e+00> : vector<64x2xf32>
      %66 = tpu.matmul %64, %65, %cst_43 {dimension_numbers = #tpu.dot_dimension_numbers<[1], [0], [0], [1], [0, 0, 1, 1], [], []>} : vector<64x16xbf16>, vector<16x2xbf16>, vector<64x2xf32> -> vector<64x2xf32>
      %c0_44 = arith.constant 0 : index
      %c0_45 = arith.constant 0 : index
      %67 = vector.load %arg5[%c0_44, %c0_45] : memref<16x8xbf16, #tpu.memory_space<vmem>>, vector<16x8xbf16>
      %cst_46 = arith.constant dense<0.000000e+00> : vector<64x8xf32>
      %68 = tpu.matmul %64, %67, %cst_46 {dimension_numbers = #tpu.dot_dimension_numbers<[1], [0], [0], [1], [0, 0, 1, 1], [], []>} : vector<64x16xbf16>, vector<16x8xbf16>, vector<64x8xf32> -> vector<64x8xf32>
      %69 = arith.maximumf %58, %66 : vector<64x2xf32>
      %70 = arith.maximumf %59, %68 : vector<64x8xf32>
      %c192_i32 = arith.constant 192 : i32
      %71 = arith.addi %c192_i32, %39 : i32
      %c0_47 = arith.constant 0 : index
      %72 = arith.index_cast %71 : i32 to index
      %c0_48 = arith.constant 0 : index
      %73 = vector.load %arg2[%c0_47, %72, %c0_48] : memref<1x256x16xf32, #tpu.memory_space<vmem>>, vector<1x64x16xf32>
      %74 = vector.shape_cast %73 : vector<1x64x16xf32> to vector<64x16xf32>
      %75 = arith.truncf %74 : vector<64x16xf32> to vector<64x16xbf16>
      %c0_49 = arith.constant 0 : index
      %c0_50 = arith.constant 0 : index
      %76 = vector.load %arg4[%c0_49, %c0_50] : memref<16x2xbf16, #tpu.memory_space<vmem>>, vector<16x2xbf16>
      %cst_51 = arith.constant dense<0.000000e+00> : vector<64x2xf32>
      %77 = tpu.matmul %75, %76, %cst_51 {dimension_numbers = #tpu.dot_dimension_numbers<[1], [0], [0], [1], [0, 0, 1, 1], [], []>} : vector<64x16xbf16>, vector<16x2xbf16>, vector<64x2xf32> -> vector<64x2xf32>
      %c0_52 = arith.constant 0 : index
      %c0_53 = arith.constant 0 : index
      %78 = vector.load %arg5[%c0_52, %c0_53] : memref<16x8xbf16, #tpu.memory_space<vmem>>, vector<16x8xbf16>
      %cst_54 = arith.constant dense<0.000000e+00> : vector<64x8xf32>
      %79 = tpu.matmul %75, %78, %cst_54 {dimension_numbers = #tpu.dot_dimension_numbers<[1], [0], [0], [1], [0, 0, 1, 1], [], []>} : vector<64x16xbf16>, vector<16x8xbf16>, vector<64x8xf32> -> vector<64x8xf32>
      %80 = arith.maximumf %69, %77 : vector<64x2xf32>
      %81 = arith.maximumf %70, %79 : vector<64x8xf32>
      %82 = arith.truncf %80 : vector<64x2xf32> to vector<64x2xbf16>
      %83 = arith.index_cast %39 : i32 to index
      %c0_55 = arith.constant 0 : index
      %84 = vector.load %arg9[%83, %c0_55] : memref<64x2xbf16, #tpu.memory_space<vmem>>, vector<64x2xbf16>
      tpu.vector_store %arg9[%83, %c0_55], %82 {strides = array<i32>} : memref<64x2xbf16, #tpu.memory_space<vmem>>, vector<64x2xbf16>,
      %85 = arith.truncf %81 : vector<64x8xf32> to vector<64x8xbf16>
      %86 = arith.index_cast %39 : i32 to index
      %c0_56 = arith.constant 0 : index
      %87 = vector.load %arg10[%86, %c0_56] : memref<64x8xbf16, #tpu.memory_space<vmem>>, vector<64x8xbf16>
      tpu.vector_store %arg10[%86, %c0_56], %85 {strides = array<i32>} : memref<64x8xbf16, #tpu.memory_space<vmem>>, vector<64x8xbf16>,
      %c1_i32 = arith.constant 1 : i32
    } else {
    }
    %c256_i32 = arith.constant 256 : i32
    %3 = arith.muli %arg1, %c256_i32 : i32
    %4 = tpu.assume_multiple %3, 256 : i32
    %c0 = arith.constant 0 : index
    %5 = arith.index_cast %4 : i32 to index
    %c0_1 = arith.constant 0 : index
    %6 = vector.load %arg2[%c0, %5, %c0_1] : memref<1x256x16xf32, #tpu.memory_space<vmem>>, vector<1x256x16xf32>
    %7 = vector.shape_cast %6 : vector<1x256x16xf32> to vector<256x16xf32>
    %8 = arith.truncf %7 : vector<256x16xf32> to vector<256x16xbf16>
    %c0_2 = arith.constant 0 : index
    %c0_3 = arith.constant 0 : index
    %9 = vector.load %arg3[%c0_2, %c0_3] : memref<16x2xbf16, #tpu.memory_space<vmem>>, vector<16x2xbf16>
    %cst = arith.constant dense<0.000000e+00> : vector<256x2xf32>
    %10 = tpu.matmul %8, %9, %cst {dimension_numbers = #tpu.dot_dimension_numbers<[1], [0], [0], [1], [0, 0, 1, 1], [], []>} : vector<256x16xbf16>, vector<16x2xbf16>, vector<256x2xf32> -> vector<256x2xf32>
    %11 = arith.truncf %10 : vector<256x2xf32> to vector<256x2xbf16>
    %c0_4 = arith.constant 0 : index
    %c0_5 = arith.constant 0 : index
    %12 = vector.load %arg9[%c0_4, %c0_5] : memref<64x2xbf16, #tpu.memory_space<vmem>>, vector<64x2xbf16>
    %c0_6 = arith.constant 0 : index
    %c0_7 = arith.constant 0 : index
    %13 = vector.load %arg10[%c0_6, %c0_7] : memref<64x8xbf16, #tpu.memory_space<vmem>>, vector<64x8xbf16>
    %cst_8 = arith.constant dense<0.000000e+00> : vector<256x64xf32>
    %14 = tpu.matmul %11, %12, %cst_8 {dimension_numbers = #tpu.dot_dimension_numbers<[1], [1], [0], [0], [0, 0, 1, 0], [], []>} : vector<256x2xbf16>, vector<64x2xbf16>, vector<256x64xf32> -> vector<256x64xf32>
    %cst_9 = arith.constant dense<0xFF800000> : vector<256xf32>
    %15 = vector.multi_reduction <maximumf>, %14, %cst_9 [1] : vector<256x64xf32> to vector<256xf32>
    %16 = vector.shape_cast %15 : vector<256xf32> to vector<256x1xf32>
    %17 = vector.broadcast %16 : vector<256x1xf32> to vector<256x64xf32>
    %18 = arith.subf %14, %17 : vector<256x64xf32>
    %19 = arith.truncf %18 : vector<256x64xf32> to vector<256x64xbf16>
    %20 = math.exp %19 : vector<256x64xbf16>
    %21 = arith.extf %20 : vector<256x64xbf16> to vector<256x64xf32>
    %cst_10 = arith.constant dense<0.000000e+00> : vector<256xf32>
    %22 = vector.multi_reduction <add>, %21, %cst_10 [1] : vector<256x64xf32> to vector<256xf32>
    %23 = vector.shape_cast %22 : vector<256xf32> to vector<256x1xf32>
    %cst_11 = arith.constant dense<0.000000e+00> : vector<256x8xf32>
    %24 = tpu.matmul %20, %13, %cst_11 {dimension_numbers = #tpu.dot_dimension_numbers<[1], [0], [0], [1], [0, 0, 1, 1], [], []>} : vector<256x64xbf16>, vector<64x8xbf16>, vector<256x8xf32> -> vector<256x8xf32>
    %25 = tpu.reciprocal %23 {approx = true} : vector<256x1xf32> -> vector<256x1xf32>
    %26 = vector.broadcast %25 : vector<256x1xf32> to vector<256x8xf32>
    %27 = arith.mulf %24, %26 : vector<256x8xf32>
    %28 = arith.truncf %27 : vector<256x8xf32> to vector<256x8xbf16>
    %c0_12 = arith.constant 0 : index
    %c0_13 = arith.constant 0 : index
    %29 = vector.load %arg6[%c0_12, %c0_13] : memref<8x16xbf16, #tpu.memory_space<vmem>>, vector<8x16xbf16>
    %cst_14 = arith.constant dense<0.000000e+00> : vector<256x16xf32>
    %30 = tpu.matmul %28, %29, %cst_14 {dimension_numbers = #tpu.dot_dimension_numbers<[1], [0], [0], [1], [0, 0, 1, 1], [], []>} : vector<256x8xbf16>, vector<8x16xbf16>, vector<256x16xf32> -> vector<256x16xf32>
    %c0_15 = arith.constant 0 : index
    %c0_16 = arith.constant 0 : index
    %31 = memref.load %arg7[%c0_15, %c0_16] : memref<1x1xf32, #tpu.memory_space<smem>>
    %32 = vector.broadcast %31 : f32 to vector<256x16xf32>
    %33 = arith.mulf %32, %30 : vector<256x16xf32>
    %34 = arith.addf %33, %7 : vector<256x16xf32>
    %c0_17 = arith.constant 0 : index
    %c0_18 = arith.constant 0 : index
    %c0_19 = arith.constant 0 : index
    %35 = vector.load %arg8[%c0_17, %c0_18, %c0_19] : memref<1x256x16xf32, #tpu.memory_space<vmem>>, vector<1x256x16xf32>
    %36 = vector.shape_cast %35 : vector<1x256x16xf32> to vector<256x16xf32>
    %37 = vector.shape_cast %34 : vector<256x16xf32> to vector<1x256x16xf32>
    tpu.vector_store %arg8[%c0_17, %c0_18, %c0_19], %37 {strides = array<i32>} : memref<1x256x16xf32, #tpu.memory_space<vmem>>, vector<1x256x16xf32>,
    return
  }
  func.func @transform_0(%arg0: i32, %arg1: i32) -> (i32, i32, i32) {
    %c0_i32 = arith.constant 0 : i32
    %c0_i32_0 = arith.constant 0 : i32
    %c0_i32_1 = arith.constant 0 : i32
    return %arg0, %c0_i32, %c0_i32_0 : i32, i32, i32
  }
  func.func @transform_1(%arg0: i32, %arg1: i32) -> (i32, i32) {
    %c0_i32 = arith.constant 0 : i32
    %c0_i32_0 = arith.constant 0 : i32
    %c0_i32_1 = arith.constant 0 : i32
    return %c0_i32, %c0_i32_0 : i32, i32
  }
  func.func @transform_2(%arg0: i32, %arg1: i32) -> (i32, i32) {
    %c0_i32 = arith.constant 0 : i32
    %c0_i32_0 = arith.constant 0 : i32
    %c0_i32_1 = arith.constant 0 : i32
    return %c0_i32, %c0_i32_0 : i32, i32
  }
  func.func @transform_3(%arg0: i32, %arg1: i32) -> (i32, i32) {
    %c0_i32 = arith.constant 0 : i32
    %c0_i32_0 = arith.constant 0 : i32
    %c0_i32_1 = arith.constant 0 : i32
    return %c0_i32, %c0_i32_0 : i32, i32
  }
  func.func @transform_4(%arg0: i32, %arg1: i32) -> (i32, i32) {
    %c0_i32 = arith.constant 0 : i32
    %c0_i32_0 = arith.constant 0 : i32
    %c0_i32_1 = arith.constant 0 : i32
    return %c0_i32, %c0_i32_0 : i32, i32
  }
  func.func @transform_5(%arg0: i32, %arg1: i32) -> (i32, i32) {
    %c0_i32 = arith.constant 0 : i32
    %c0_i32_0 = arith.constant 0 : i32
    %c0_i32_1 = arith.constant 0 : i32
    return %c0_i32, %c0_i32_0 : i32, i32
  }
  func.func @transform_6(%arg0: i32, %arg1: i32) -> (i32, i32, i32) {
    %c0_i32 = arith.constant 0 : i32
    %c0_i32_0 = arith.constant 0 : i32
    return %arg0, %arg1, %c0_i32 : i32, i32, i32
  }
}

</mosaic_0001>

<llo_original>
// kernel: tpu_custom_call.1
$region0: #{tpu_custom_call.1}
  #allocation0 [shape = 'u32[]', space=smem, size = 0x4, offset = 0x4, fixed_abs, tag = 'smem constant byte address 0x4 - core index']
  #allocation1 [shape = 'u32[144,128]{1,0:T(1,128)}', space=vmem, size = 0x12000, scoped, tag = 'internal scratch']
  #allocation2 [shape = 'bf16[64,2]{1,0:T(16,128)(2,1)}', space=vmem, size = 0x4000, scoped, tag = 'scratch operand']
  #allocation3 [shape = 'bf16[64,8]{1,0:T(16,128)(2,1)}', space=vmem, size = 0x4000, scoped, tag = 'scratch operand']
  #allocation4 [shape = 'f32[1,1]{1,0:T(1,128)S(6)}', space=smem, size = 0x200, scoped, tag = 'scoped memory for tpu_custom_call.1']
  %s0 = inlined_call_operand.vmem [shape: f32[2,256,16], index: 0, kind: input, shape index: {}]
  %s1 = inlined_call_operand.vmem [shape: bf16[16,2], index: 1, kind: input, shape index: {}]
  %s2 = inlined_call_operand.vmem [shape: bf16[16,2], index: 2, kind: input, shape index: {}]
  %s3 = inlined_call_operand.vmem [shape: bf16[16,8], index: 3, kind: input, shape index: {}]
  %s4 = inlined_call_operand.vmem [shape: bf16[8,16], index: 4, kind: input, shape index: {}]
  %s5 = inlined_call_operand.<no memory space> [shape: f32[1,1], index: 5, kind: input, shape index: {}]
  %s6 = inlined_call_operand.vmem [shape: f32[2,256,16], index: 6, kind: output, shape index: {}]
  %s7 = sld [smem:[#allocation0]]
  $region61: #{tpu_custom_call.1} parent=0
    _
  %s9 = ssub.s32 1, %s7
  %s10 = scalar_select 0, %s9, %s7
  %11 = sst [smem:[#allocation4]] %s5
  loop: start=0, step=1, limit=4
  $region2: #{tpu_custom_call.1} parent=0 // loop_pre_header
    _
  $region3: #{tpu_custom_call.1} parent=0 // loop_header
    %s13 = sphi 0, %s17
    %p14 = scmp.ge.s32.totalorder %s13, 4
    %s20 = sphi 0, %s32
    %s21 = sphi 0, %s28
    %s22 = sphi 0, %s20
    %s23 = sphi 0, %s21
    %s24 = sphi 0, %s22
    %s25 = sphi 0, %s23
    %s35 = sphi 0, %s37
    %s38 = sphi 0, %s35
    %s39 = sphi 0, %s38
    %s55 = sphi 0, %s39
    %s59 = sphi 0, %s59
    %s61 = sphi 0, %s59
    %s62 = sphi 0, %s61
    %s76 = sphi 0, %s62
    %s80 = sphi 0, %s80
    %s82 = sphi 0, %s80
    %s83 = sphi 0, %s82
    %s97 = sphi 0, %s83
    %s101 = sphi 0, %s101
    %s103 = sphi 0, %s101
    %s104 = sphi 0, %s103
    %s118 = sphi 0, %s104
    %s122 = sphi 0, %s122
    %s124 = sphi 0, %s122
    %s125 = sphi 0, %s124
    %s139 = sphi 0, %s125
    %s143 = sphi 0, %s143
    %s145 = sphi 0, %s143
    %s146 = sphi 0, %s145
    %s160 = sphi 0, %s146
    %s168 = sphi 0, %s170
    %s171 = sphi 0, %s168
    %s172 = sphi 0, %s171
    %s188 = sphi 0, %s172
  $region4: #{tpu_custom_call.1} parent=0 // loop_header_branch
    %16 = sbr.rel (%p14) target = $region8
  $region5: #{tpu_custom_call.1} parent=0 // loop_body
    %s18 = ssub.s32 %s13, 1
    %s19 = ssub.s32 %s13, 2
    %s26 = sadd.s32 1, %s21
    %p27 = scmp.ge.s32.totalorder %s26, 1
    %s28 = scalar_select %p27, 0, %s26
    %s29 = sadd.s32 1, %s20
    %s30 = scalar_select %p27, %s29, %s20
    %p31 = scmp.ge.s32.totalorder %s30, 2
    %s32 = scalar_select %p31, 0, %s30
    %s33 = ssub.s32 %s20, %s32
    %p34 = scmp.eq.s32.totalorder %s33, 0
    %s36 = sadd.s32 %s35, 1
    %s37 = scalar_select %p34, %s35, %s36
    %p40 = pneg %p34
    %p41 = scmp.eq.s32.totalorder %s13, 1
    %p42 = por %p40, %p41
    %p43 = scmp.ne.s32.totalorder %s35, %s38
    %p44 = scmp.eq.s32.totalorder %s13, 0
    %p45 = por %p43, %p44
    %p46 = scmp.ne.s32.totalorder %s35, %s38
    %p47 = scmp.eq.s32.totalorder %s18, 1
    %p48 = por %p46, %p47
    %p49 = scmp.ne.s32.totalorder %s38, %s39
    %p50 = scmp.eq.s32.totalorder %s18, 0
    %p51 = por %p49, %p50
    %p52 = scmp.ne.s32.totalorder %s38, %s39
    %p53 = scmp.eq.s32.totalorder %s19, 1
    %p54 = por %p52, %p53
    %p56 = scmp.ne.s32.totalorder %s39, %s55
    %p57 = scmp.eq.s32.totalorder %s19, 0
    %p58 = por %p56, %p57
    %s60 = sadd.s32 %s59, 1
    %p63 = scmp.eq.s32.totalorder %s13, 1
    %p64 = scmp.ne.s32.totalorder %s59, %s61
    %p65 = scmp.eq.s32.totalorder %s13, 0
    %p66 = por %p64, %p65
    %p67 = scmp.ne.s32.totalorder %s59, %s61
    %p68 = scmp.eq.s32.totalorder %s18, 1
    %p69 = por %p67, %p68
    %p70 = scmp.ne.s32.totalorder %s61, %s62
    %p71 = scmp.eq.s32.totalorder %s18, 0
    %p72 = por %p70, %p71
    %p73 = scmp.ne.s32.totalorder %s61, %s62
    %p74 = scmp.eq.s32.totalorder %s19, 1
    %p75 = por %p73, %p74
    %p77 = scmp.ne.s32.totalorder %s62, %s76
    %p78 = scmp.eq.s32.totalorder %s19, 0
    %p79 = por %p77, %p78
    %s81 = sadd.s32 %s80, 1
    %p84 = scmp.eq.s32.totalorder %s13, 1
    %p85 = scmp.ne.s32.totalorder %s80, %s82
    %p86 = scmp.eq.s32.totalorder %s13, 0
    %p87 = por %p85, %p86
    %p88 = scmp.ne.s32.totalorder %s80, %s82
    %p89 = scmp.eq.s32.totalorder %s18, 1
    %p90 = por %p88, %p89
    %p91 = scmp.ne.s32.totalorder %s82, %s83
    %p92 = scmp.eq.s32.totalorder %s18, 0
    %p93 = por %p91, %p92
    %p94 = scmp.ne.s32.totalorder %s82, %s83
    %p95 = scmp.eq.s32.totalorder %s19, 1
    %p96 = por %p94, %p95
    %p98 = scmp.ne.s32.totalorder %s83, %s97
    %p99 = scmp.eq.s32.totalorder %s19, 0
    %p100 = por %p98, %p99
    %s102 = sadd.s32 %s101, 1
    %p105 = scmp.eq.s32.totalorder %s13, 1
    %p106 = scmp.ne.s32.totalorder %s101, %s103
    %p107 = scmp.eq.s32.totalorder %s13, 0
    %p108 = por %p106, %p107
    %p109 = scmp.ne.s32.totalorder %s101, %s103
    %p110 = scmp.eq.s32.totalorder %s18, 1
    %p111 = por %p109, %p110
    %p112 = scmp.ne.s32.totalorder %s103, %s104
    %p113 = scmp.eq.s32.totalorder %s18, 0
    %p114 = por %p112, %p113
    %p115 = scmp.ne.s32.totalorder %s103, %s104
    %p116 = scmp.eq.s32.totalorder %s19, 1
    %p117 = por %p115, %p116
    %p119 = scmp.ne.s32.totalorder %s104, %s118
    %p120 = scmp.eq.s32.totalorder %s19, 0
    %p121 = por %p119, %p120
    %s123 = sadd.s32 %s122, 1
    %p126 = scmp.eq.s32.totalorder %s13, 1
    %p127 = scmp.ne.s32.totalorder %s122, %s124
    %p128 = scmp.eq.s32.totalorder %s13, 0
    %p129 = por %p127, %p128
    %p130 = scmp.ne.s32.totalorder %s122, %s124
    %p131 = scmp.eq.s32.totalorder %s18, 1
    %p132 = por %p130, %p131
    %p133 = scmp.ne.s32.totalorder %s124, %s125
    %p134 = scmp.eq.s32.totalorder %s18, 0
    %p135 = por %p133, %p134
    %p136 = scmp.ne.s32.totalorder %s124, %s125
    %p137 = scmp.eq.s32.totalorder %s19, 1
    %p138 = por %p136, %p137
    %p140 = scmp.ne.s32.totalorder %s125, %s139
    %p141 = scmp.eq.s32.totalorder %s19, 0
    %p142 = por %p140, %p141
    %s144 = sadd.s32 %s143, 1
    %p147 = scmp.eq.s32.totalorder %s13, 1
    %p148 = scmp.ne.s32.totalorder %s143, %s145
    %p149 = scmp.eq.s32.totalorder %s13, 0
    %p150 = por %p148, %p149
    %p151 = scmp.ne.s32.totalorder %s143, %s145
    %p152 = scmp.eq.s32.totalorder %s18, 1
    %p153 = por %p151, %p152
    %p154 = scmp.ne.s32.totalorder %s145, %s146
    %p155 = scmp.eq.s32.totalorder %s18, 0
    %p156 = por %p154, %p155
    %p157 = scmp.ne.s32.totalorder %s145, %s146
    %p158 = scmp.eq.s32.totalorder %s19, 1
    %p159 = por %p157, %p158
    %p161 = scmp.ne.s32.totalorder %s146, %s160
    %p162 = scmp.eq.s32.totalorder %s19, 0
    %p163 = por %p161, %p162
    %s164 = ssub.s32 %s20, %s32
    %s165 = ssub.s32 %s21, %s28
    %s166 = sor.u32 %s164, %s165
    %p167 = scmp.eq.s32.totalorder %s166, 0
    %s169 = sadd.s32 %s168, 1
    %s170 = scalar_select %p167, %s168, %s169
    %p173 = pneg %p167
    %p174 = scmp.eq.s32.totalorder %s13, 1
    %p175 = por %p173, %p174
    %p176 = scmp.ne.s32.totalorder %s168, %s171
    %p177 = scmp.eq.s32.totalorder %s13, 0
    %p178 = por %p176, %p177
    %p179 = scmp.ne.s32.totalorder %s168, %s171
    %p180 = scmp.eq.s32.totalorder %s18, 1
    %p181 = por %p179, %p180
    %p182 = scmp.ne.s32.totalorder %s171, %s172
    %p183 = scmp.eq.s32.totalorder %s18, 0
    %p184 = por %p182, %p183
    %p185 = scmp.ne.s32.totalorder %s171, %s172
    %p186 = scmp.eq.s32.totalorder %s19, 1
    %p187 = por %p185, %p186
    %p189 = scmp.ne.s32.totalorder %s172, %s188
    %p190 = scmp.eq.s32.totalorder %s19, 0
    %p191 = por %p189, %p190
    %p192 = scmp.le.s32.totalorder 1, %s13
    %p193 = scmp.lt.s32.totalorder %s13, 3
    %p194 = pnand %p192, %p193
    %p195 = pneg %p194
    // Predicated region
    $region9: #{tpu_custom_call.1} parent=5 // pred_check
      _
    $region10: #{tpu_custom_call.1} parent=5 // pred_check_branch
      %197 = sbr.rel (%p194) target = $region12
    $region11: #{tpu_custom_call.1} parent=5 // pred_region
      %s198 = ssub.s32 %s13, 1
      // Predicated region
      $region13: #{tpu_custom_call.1} parent=11 // pred_check
        %p199 = pneg %p72
      $region14: #{tpu_custom_call.1} parent=11 // pred_check_branch
        %201 = sbr.rel (%p199) target = $region16
      $region15: #{tpu_custom_call.1} parent=11 // pred_region
        _
      $region16: #{tpu_custom_call.1} parent=11 // pred_fallthru
        _
      // Predicated region
      $region17: #{tpu_custom_call.1} parent=11 // pred_check
        %p202 = pneg %p93
      $region18: #{tpu_custom_call.1} parent=11 // pred_check_branch
        %204 = sbr.rel (%p202) target = $region20
      $region19: #{tpu_custom_call.1} parent=11 // pred_region
        _
      $region20: #{tpu_custom_call.1} parent=11 // pred_fallthru
        _
      // Predicated region
      $region21: #{tpu_custom_call.1} parent=11 // pred_check
        %p205 = pneg %p114
      $region22: #{tpu_custom_call.1} parent=11 // pred_check_branch
        %207 = sbr.rel (%p205) target = $region24
      $region23: #{tpu_custom_call.1} parent=11 // pred_region
        _
      $region24: #{tpu_custom_call.1} parent=11 // pred_fallthru
        _
      // Predicated region
      $region25: #{tpu_custom_call.1} parent=11 // pred_check
        %p208 = pneg %p135
      $region26: #{tpu_custom_call.1} parent=11 // pred_check_branch
        %210 = sbr.rel (%p208) target = $region28
      $region27: #{tpu_custom_call.1} parent=11 // pred_region
        _
      $region28: #{tpu_custom_call.1} parent=11 // pred_fallthru
        _
      // Predicated region
      $region29: #{tpu_custom_call.1} parent=11 // pred_check
        %p211 = pneg %p156
      $region30: #{tpu_custom_call.1} parent=11 // pred_check_branch
        %213 = sbr.rel (%p211) target = $region32
      $region31: #{tpu_custom_call.1} parent=11 // pred_region
        _
      $region32: #{tpu_custom_call.1} parent=11 // pred_fallthru
        _
    $region12: #{tpu_custom_call.1} parent=5 // pred_fallthru
      _
    %p214 = scmp.lt.s32.totalorder %s13, 2
    // Predicated region
    $region33: #{tpu_custom_call.1} parent=5 // pred_check
      %p215 = pneg %p214
    $region34: #{tpu_custom_call.1} parent=5 // pred_check_branch
      %217 = sbr.rel (%p215) target = $region36
    $region35: #{tpu_custom_call.1} parent=5 // pred_region
      // Predicated region
      $region37: #{tpu_custom_call.1} parent=35 // pred_check
        %p218 = pneg %p45
      $region38: #{tpu_custom_call.1} parent=35 // pred_check_branch
        %220 = sbr.rel (%p218) target = $region40
      $region39: #{tpu_custom_call.1} parent=35 // pred_region
        %p221 = scmp.lt.s32.totalorder %s20, 1
        %s222 = scalar_select %p221, %s20, 1
        %s223 = smul.addr %s222, 32
        %s224 = smul.addr %s223, 8
        %s225 = scalar_lea.vmem %s0, %s224
      $region40: #{tpu_custom_call.1} parent=35 // pred_fallthru
        _
    $region36: #{tpu_custom_call.1} parent=5 // pred_fallthru
      _
    %p226 = scmp.le.s32.totalorder 1, %s13
    %p227 = scmp.lt.s32.totalorder %s13, 3
    %p228 = pnand %p226, %p227
    %p229 = pneg %p228
    // Predicated region
    $region41: #{tpu_custom_call.1} parent=5 // pred_check
      _
    $region42: #{tpu_custom_call.1} parent=5 // pred_check_branch
      %231 = sbr.rel (%p228) target = $region44
    $region43: #{tpu_custom_call.1} parent=5 // pred_region
      %s232 = ssub.s32 %s13, 1
      %p233 = scmp.lt.s32.totalorder %s22, 1
      %s234 = scalar_select %p233, %s22, 1
      %s235 = smul.addr %s234, 32
      %s236 = smul.addr %s235, 8
      %s237 = scalar_lea.vmem %s0, %s236
      %p238 = pneg %p51
      %p239 = pneg %p48
      %p240 = pneg %p72
      %p241 = pneg %p69
      %p242 = pneg %p93
      %p243 = pneg %p90
      %p244 = pneg %p114
      %p245 = pneg %p111
      %p246 = pneg %p135
      %p247 = pneg %p132
      %p248 = pneg %p156
      %p249 = pneg %p153
      %p250 = pneg %p184
      %p251 = pneg %p181
      %s252 = smul.u32 32, %s23
      %p253 = scmp.lt.s32.totalorder %s22, 1
      %s254 = scalar_select %p253, %s22, 1
      %p255 = scmp.lt.s32.totalorder %s252, 31
      %s256 = scalar_select %p255, %s252, 31
      %s257 = smul.addr %s254, 32
      %s258 = sadd.s32 %s256, %s257
      %s259 = smul.addr %s258, 8
      %s260 = scalar_lea.vmem %s6, %s259
      %p261 = scmp.lt.s32.totalorder %s22, 1
      %s262 = scalar_select %p261, %s22, 1
      %s263 = smul.addr %s262, 32
      %s264 = smul.addr %s263, 8
      %s265 = scalar_lea.vmem %s0, %s264
      %s266 = smul.u32 32, %s23
      %p267 = scmp.lt.s32.totalorder %s22, 1
      %s268 = scalar_select %p267, %s22, 1
      %p269 = scmp.lt.s32.totalorder %s266, 31
      %s270 = scalar_select %p269, %s266, 31
      %s271 = smul.addr %s268, 32
      %s272 = sadd.s32 %s270, %s271
      %s273 = smul.addr %s272, 8
      %s274 = scalar_lea.vmem %s6, %s273
      %s275 = smul.u32 32, %s23
      %p277 = scmp.eq.s32.totalorder %s23, 0
      // Predicated region
      $region45: #{tpu_custom_call.1} parent=43 // pred_check
        %p278 = pneg %p277
      $region46: #{tpu_custom_call.1} parent=43 // pred_check_branch
        %280 = sbr.rel (%p278) target = $region48
      $region47: #{tpu_custom_call.1} parent=43 // pred_region
        %v281 = vld [vmem:[%s265] sm:$0xff]
        %v282 = vld [vmem:[%s265 + $0x8] sm:$0xff]
        %v283 = vld [vmem:[%s265 + $0x10] sm:$0xff]
        %v284 = vld [vmem:[%s265 + $0x18] sm:$0xff]
        %v285 = vld [vmem:[%s265 + $0x20] sm:$0xff]
        %v286 = vld [vmem:[%s265 + $0x28] sm:$0xff]
        %v287 = vld [vmem:[%s265 + $0x30] sm:$0xff]
        %v288 = vld [vmem:[%s265 + $0x38] sm:$0xff]
        %v289 = vpack.c.bf16 %v282, %v281
        %v290 = vpack.c.bf16 %v284, %v283
        %v291 = vpack.c.bf16 %v286, %v285
        %v292 = vpack.c.bf16 %v288, %v287
        %v293 = vld [vmem:[%s2] sm:$0xf]
        %v294 = vld [vmem:[%s2 + $0x4] sm:$0xf]
        %v297 = vunpack.c.l.b16 %v293
        %v298 = vunpack.c.l.b16 %v294
        %v299 = vpack.c.b16 %v298, %v297
        %vm301 = vcmask 130048
        %v303 = vsel %vm301, %v289, 0
        %v306 = vsel %vm301, %v290, 0
        %v309 = vsel %vm301, %v291, 0
        %v312 = vsel %vm301, %v292, 0
        %314 = vmatprep.subr.bf16.mxu0 0
        %315 = vmatpush1.bf16.msra.mxu0 %v299
        %316 = vmatprep.subr.bf16.mxu0 0
        %317 = vmatpush1.bf16.msra.mxu0 0
        %318 = vmatprep.subr.bf16.mxu0 0
        %319 = vmatpush1.bf16.msra.mxu0 0
        %320 = vmatprep.subr.bf16.mxu0 0
        %321 = vmatpush1.bf16.msra.mxu0 0
        %322 = vmatprep.subr.bf16.mxu0 0
        %323 = vmatpush1.bf16.msra.mxu0 0
        %324 = vmatprep.subr.bf16.mxu0 0
        %325 = vmatpush1.bf16.msra.mxu0 0
        %326 = vmatprep.subr.bf16.mxu0 0
        %327 = vmatpush1.bf16.msra.mxu0 0
        %328 = vmatprep.subr.bf16.mxu0 0
        %329 = vmatpush1.bf16.msra.mxu0 0
        %330 = vmatprep.subr.bf16.mxu0 0
        %331 = vmatpush1.bf16.msra.mxu0 0
        %332 = vmatprep.subr.bf16.mxu0 0
        %333 = vmatpush1.bf16.msra.mxu0 0
        %334 = vmatprep.subr.bf16.mxu0 0
        %335 = vmatpush1.bf16.msra.mxu0 0
        %336 = vmatprep.subr.bf16.mxu0 0
        %337 = vmatpush1.bf16.msra.mxu0 0
        %338 = vmatprep.subr.bf16.mxu0 0
        %339 = vmatpush1.bf16.msra.mxu0 0
        %340 = vmatprep.subr.bf16.mxu0 0
        %341 = vmatpush1.bf16.msra.mxu0 0
        %342 = vmatprep.subr.bf16.mxu0 0
        %343 = vmatpush1.bf16.msra.mxu0 0
        %344 = vmatprep.subr.bf16.mxu0 0
        %345 = vmatpush1.bf16.msra.mxu0 0
        %346 = vmatprep.mubr.bf16.mxu0 0
        %347 = vmatmul.mubr.bf16.gmra.mrb[0].mxu0 %v303
        %v348 = vpop.f32.mrb[0].mxu0
        %v349 = vadd.f32 0.0, %v348
        %v350 = vpop.f32.mrb[0].mxu0
        %v351 = vpop.f32.mrb[0].mxu0
        %v352 = vadd.f32 0.0, %v351
        %v353 = vpop.f32.mrb[0].mxu0
        %354 = vmatprep.mubr.bf16.mxu0 0
        %355 = vmatmul.mubr.bf16.gmra.mrb[0].mxu0 %v306
        %v356 = vpop.f32.mrb[0].mxu0
        %v357 = vadd.f32 0.0, %v356
        %v358 = vpop.f32.mrb[0].mxu0
        %v359 = vpop.f32.mrb[0].mxu0
        %v360 = vadd.f32 0.0, %v359
        %v361 = vpop.f32.mrb[0].mxu0
        %362 = vmatprep.mubr.bf16.mxu0 0
        %363 = vmatmul.mubr.bf16.gmra.mrb[0].mxu0 %v309
        %v364 = vpop.f32.mrb[0].mxu0
        %v365 = vadd.f32 0.0, %v364
        %v366 = vpop.f32.mrb[0].mxu0
        %v367 = vpop.f32.mrb[0].mxu0
        %v368 = vadd.f32 0.0, %v367
        %v369 = vpop.f32.mrb[0].mxu0
        %370 = vmatprep.mubr.bf16.mxu0 0
        %371 = vmatmul.mubr.bf16.gmra.mrb[0].mxu0 %v312
        %v372 = vpop.f32.mrb[0].mxu0
        %v373 = vadd.f32 0.0, %v372
        %v374 = vpop.f32.mrb[0].mxu0
        %v375 = vpop.f32.mrb[0].mxu0
        %v376 = vadd.f32 0.0, %v375
        %v377 = vpop.f32.mrb[0].mxu0
        %378 = vdwg.mxu0
        %v379 = vld [vmem:[%s3] sm:$0xf]
        %v380 = vld [vmem:[%s3 + $0x4] sm:$0xf]
        %v383 = vunpack.c.l.b16 %v379
        %v384 = vunpack.c.l.b16 %v380
        %v385 = vpack.c.b16 %v384, %v383
        %387 = vmatprep.subr.bf16.mxu0 0
        %388 = vmatpush1.bf16.msra.mxu0 %v385
        %389 = vmatprep.subr.bf16.mxu0 0
        %390 = vmatpush1.bf16.msra.mxu0 0
        %391 = vmatprep.subr.bf16.mxu0 0
        %392 = vmatpush1.bf16.msra.mxu0 0
        %393 = vmatprep.subr.bf16.mxu0 0
        %394 = vmatpush1.bf16.msra.mxu0 0
        %395 = vmatprep.subr.bf16.mxu0 0
        %396 = vmatpush1.bf16.msra.mxu0 0
        %397 = vmatprep.subr.bf16.mxu0 0
        %398 = vmatpush1.bf16.msra.mxu0 0
        %399 = vmatprep.subr.bf16.mxu0 0
        %400 = vmatpush1.bf16.msra.mxu0 0
        %401 = vmatprep.subr.bf16.mxu0 0
        %402 = vmatpush1.bf16.msra.mxu0 0
        %403 = vmatprep.subr.bf16.mxu0 0
        %404 = vmatpush1.bf16.msra.mxu0 0
        %405 = vmatprep.subr.bf16.mxu0 0
        %406 = vmatpush1.bf16.msra.mxu0 0
        %407 = vmatprep.subr.bf16.mxu0 0
        %408 = vmatpush1.bf16.msra.mxu0 0
        %409 = vmatprep.subr.bf16.mxu0 0
        %410 = vmatpush1.bf16.msra.mxu0 0
        %411 = vmatprep.subr.bf16.mxu0 0
        %412 = vmatpush1.bf16.msra.mxu0 0
        %413 = vmatprep.subr.bf16.mxu0 0
        %414 = vmatpush1.bf16.msra.mxu0 0
        %415 = vmatprep.subr.bf16.mxu0 0
        %416 = vmatpush1.bf16.msra.mxu0 0
        %417 = vmatprep.subr.bf16.mxu0 0
        %418 = vmatpush1.bf16.msra.mxu0 0
        %419 = vmatprep.mubr.bf16.mxu0 0
        %420 = vmatmul.mubr.bf16.gmra.mrb[0].mxu0 %v303
        %v421 = vpop.f32.mrb[0].mxu0
        %v422 = vadd.f32 0.0, %v421
        %v423 = vpop.f32.mrb[0].mxu0
        %v424 = vpop.f32.mrb[0].mxu0
        %v425 = vadd.f32 0.0, %v424
        %v426 = vpop.f32.mrb[0].mxu0
        %427 = vmatprep.mubr.bf16.mxu0 0
        %428 = vmatmul.mubr.bf16.gmra.mrb[0].mxu0 %v306
        %v429 = vpop.f32.mrb[0].mxu0
        %v430 = vadd.f32 0.0, %v429
        %v431 = vpop.f32.mrb[0].mxu0
        %v432 = vpop.f32.mrb[0].mxu0
        %v433 = vadd.f32 0.0, %v432
        %v434 = vpop.f32.mrb[0].mxu0
        %435 = vmatprep.mubr.bf16.mxu0 0
        %436 = vmatmul.mubr.bf16.gmra.mrb[0].mxu0 %v309
        %v437 = vpop.f32.mrb[0].mxu0
        %v438 = vadd.f32 0.0, %v437
        %v439 = vpop.f32.mrb[0].mxu0
        %v440 = vpop.f32.mrb[0].mxu0
        %v441 = vadd.f32 0.0, %v440
        %v442 = vpop.f32.mrb[0].mxu0
        %443 = vmatprep.mubr.bf16.mxu0 0
        %444 = vmatmul.mubr.bf16.gmra.mrb[0].mxu0 %v312
        %v445 = vpop.f32.mrb[0].mxu0
        %v446 = vadd.f32 0.0, %v445
        %v447 = vpop.f32.mrb[0].mxu0
        %v448 = vpop.f32.mrb[0].mxu0
        %v449 = vadd.f32 0.0, %v448
        %v450 = vpop.f32.mrb[0].mxu0
        %451 = vdwg.mxu0
        %s452 = sadd.s32 0, 64
        %s453 = scalar_lea.vmem %s265, %s452
        %v454 = vld [vmem:[%s453] sm:$0xff]
        %v455 = vld [vmem:[%s453 + $0x8] sm:$0xff]
        %v456 = vld [vmem:[%s453 + $0x10] sm:$0xff]
        %v457 = vld [vmem:[%s453 + $0x18] sm:$0xff]
        %v458 = vld [vmem:[%s453 + $0x20] sm:$0xff]
        %v459 = vld [vmem:[%s453 + $0x28] sm:$0xff]
        %v460 = vld [vmem:[%s453 + $0x30] sm:$0xff]
        %v461 = vld [vmem:[%s453 + $0x38] sm:$0xff]
        %v462 = vpack.c.bf16 %v455, %v454
        %v463 = vpack.c.bf16 %v457, %v456
        %v464 = vpack.c.bf16 %v459, %v458
        %v465 = vpack.c.bf16 %v461, %v460
        %v467 = vsel %vm301, %v462, 0
        %v470 = vsel %vm301, %v463, 0
        %v473 = vsel %vm301, %v464, 0
        %v476 = vsel %vm301, %v465, 0
        %478 = vmatprep.subr.bf16.mxu0 0
        %479 = vmatpush1.bf16.msra.mxu0 %v299
        %480 = vmatprep.subr.bf16.mxu0 0
        %481 = vmatpush1.bf16.msra.mxu0 0
        %482 = vmatprep.subr.bf16.mxu0 0
        %483 = vmatpush1.bf16.msra.mxu0 0
        %484 = vmatprep.subr.bf16.mxu0 0
        %485 = vmatpush1.bf16.msra.mxu0 0
        %486 = vmatprep.subr.bf16.mxu0 0
        %487 = vmatpush1.bf16.msra.mxu0 0
        %488 = vmatprep.subr.bf16.mxu0 0
        %489 = vmatpush1.bf16.msra.mxu0 0
        %490 = vmatprep.subr.bf16.mxu0 0
        %491 = vmatpush1.bf16.msra.mxu0 0
        %492 = vmatprep.subr.bf16.mxu0 0
        %493 = vmatpush1.bf16.msra.mxu0 0
        %494 = vmatprep.subr.bf16.mxu0 0
        %495 = vmatpush1.bf16.msra.mxu0 0
        %496 = vmatprep.subr.bf16.mxu0 0
        %497 = vmatpush1.bf16.msra.mxu0 0
        %498 = vmatprep.subr.bf16.mxu0 0
        %499 = vmatpush1.bf16.msra.mxu0 0
        %500 = vmatprep.subr.bf16.mxu0 0
        %501 = vmatpush1.bf16.msra.mxu0 0
        %502 = vmatprep.subr.bf16.mxu0 0
        %503 = vmatpush1.bf16.msra.mxu0 0
        %504 = vmatprep.subr.bf16.mxu0 0
        %505 = vmatpush1.bf16.msra.mxu0 0
        %506 = vmatprep.subr.bf16.mxu0 0
        %507 = vmatpush1.bf16.msra.mxu0 0
        %508 = vmatprep.subr.bf16.mxu0 0
        %509 = vmatpush1.bf16.msra.mxu0 0
        %510 = vmatprep.mubr.bf16.mxu0 0
        %511 = vmatmul.mubr.bf16.gmra.mrb[0].mxu0 %v467
        %v512 = vpop.f32.mrb[0].mxu0
        %v513 = vadd.f32 0.0, %v512
        %v514 = vpop.f32.mrb[0].mxu0
        %v515 = vpop.f32.mrb[0].mxu0
        %v516 = vadd.f32 0.0, %v515
        %v517 = vpop.f32.mrb[0].mxu0
        %518 = vmatprep.mubr.bf16.mxu0 0
        %519 = vmatmul.mubr.bf16.gmra.mrb[0].mxu0 %v470
        %v520 = vpop.f32.mrb[0].mxu0
        %v521 = vadd.f32 0.0, %v520
        %v522 = vpop.f32.mrb[0].mxu0
        %v523 = vpop.f32.mrb[0].mxu0
        %v524 = vadd.f32 0.0, %v523
        %v525 = vpop.f32.mrb[0].mxu0
        %526 = vmatprep.mubr.bf16.mxu0 0
        %527 = vmatmul.mubr.bf16.gmra.mrb[0].mxu0 %v473
        %v528 = vpop.f32.mrb[0].mxu0
        %v529 = vadd.f32 0.0, %v528
        %v530 = vpop.f32.mrb[0].mxu0
        %v531 = vpop.f32.mrb[0].mxu0
        %v532 = vadd.f32 0.0, %v531
        %v533 = vpop.f32.mrb[0].mxu0
        %534 = vmatprep.mubr.bf16.mxu0 0
        %535 = vmatmul.mubr.bf16.gmra.mrb[0].mxu0 %v476
        %v536 = vpop.f32.mrb[0].mxu0
        %v537 = vadd.f32 0.0, %v536
        %v538 = vpop.f32.mrb[0].mxu0
        %v539 = vpop.f32.mrb[0].mxu0
        %v540 = vadd.f32 0.0, %v539
        %v541 = vpop.f32.mrb[0].mxu0
        %542 = vdwg.mxu0
        %543 = vmatprep.subr.bf16.mxu0 0
        %544 = vmatpush1.bf16.msra.mxu0 %v385
        %545 = vmatprep.subr.bf16.mxu0 0
        %546 = vmatpush1.bf16.msra.mxu0 0
        %547 = vmatprep.subr.bf16.mxu0 0
        %548 = vmatpush1.bf16.msra.mxu0 0
        %549 = vmatprep.subr.bf16.mxu0 0
        %550 = vmatpush1.bf16.msra.mxu0 0
        %551 = vmatprep.subr.bf16.mxu0 0
        %552 = vmatpush1.bf16.msra.mxu0 0
        %553 = vmatprep.subr.bf16.mxu0 0
        %554 = vmatpush1.bf16.msra.mxu0 0
        %555 = vmatprep.subr.bf16.mxu0 0
        %556 = vmatpush1.bf16.msra.mxu0 0
        %557 = vmatprep.subr.bf16.mxu0 0
        %558 = vmatpush1.bf16.msra.mxu0 0
        %559 = vmatprep.subr.bf16.mxu0 0
        %560 = vmatpush1.bf16.msra.mxu0 0
        %561 = vmatprep.subr.bf16.mxu0 0
        %562 = vmatpush1.bf16.msra.mxu0 0
        %563 = vmatprep.subr.bf16.mxu0 0
        %564 = vmatpush1.bf16.msra.mxu0 0
        %565 = vmatprep.subr.bf16.mxu0 0
        %566 = vmatpush1.bf16.msra.mxu0 0
        %567 = vmatprep.subr.bf16.mxu0 0
        %568 = vmatpush1.bf16.msra.mxu0 0
        %569 = vmatprep.subr.bf16.mxu0 0
        %570 = vmatpush1.bf16.msra.mxu0 0
        %571 = vmatprep.subr.bf16.mxu0 0
        %572 = vmatpush1.bf16.msra.mxu0 0
        %573 = vmatprep.subr.bf16.mxu0 0
        %574 = vmatpush1.bf16.msra.mxu0 0
        %575 = vmatprep.mubr.bf16.mxu0 0
        %576 = vmatmul.mubr.bf16.gmra.mrb[0].mxu0 %v467
        %v577 = vpop.f32.mrb[0].mxu0
        %v578 = vadd.f32 0.0, %v577
        %v579 = vpop.f32.mrb[0].mxu0
        %v580 = vpop.f32.mrb[0].mxu0
        %v581 = vadd.f32 0.0, %v580
        %v582 = vpop.f32.mrb[0].mxu0
        %583 = vmatprep.mubr.bf16.mxu0 0
        %584 = vmatmul.mubr.bf16.gmra.mrb[0].mxu0 %v470
        %v585 = vpop.f32.mrb[0].mxu0
        %v586 = vadd.f32 0.0, %v585
        %v587 = vpop.f32.mrb[0].mxu0
        %v588 = vpop.f32.mrb[0].mxu0
        %v589 = vadd.f32 0.0, %v588
        %v590 = vpop.f32.mrb[0].mxu0
        %591 = vmatprep.mubr.bf16.mxu0 0
        %592 = vmatmul.mubr.bf16.gmra.mrb[0].mxu0 %v473
        %v593 = vpop.f32.mrb[0].mxu0
        %v594 = vadd.f32 0.0, %v593
        %v595 = vpop.f32.mrb[0].mxu0
        %v596 = vpop.f32.mrb[0].mxu0
        %v597 = vadd.f32 0.0, %v596
        %v598 = vpop.f32.mrb[0].mxu0
        %599 = vmatprep.mubr.bf16.mxu0 0
        %600 = vmatmul.mubr.bf16.gmra.mrb[0].mxu0 %v476
        %v601 = vpop.f32.mrb[0].mxu0
        %v602 = vadd.f32 0.0, %v601
        %v603 = vpop.f32.mrb[0].mxu0
        %v604 = vpop.f32.mrb[0].mxu0
        %v605 = vadd.f32 0.0, %v604
        %v606 = vpop.f32.mrb[0].mxu0
        %607 = vdwg.mxu0
        %v608 = vmax.f32 %v349, %v513
        %v609 = vmax.f32 %v352, %v516
        %v610 = vmax.f32 %v357, %v521
        %v611 = vmax.f32 %v360, %v524
        %v612 = vmax.f32 %v365, %v529
        %v613 = vmax.f32 %v368, %v532
        %v614 = vmax.f32 %v373, %v537
        %v615 = vmax.f32 %v376, %v540
        %v616 = vmax.f32 %v422, %v578
        %v617 = vmax.f32 %v425, %v581
        %v618 = vmax.f32 %v430, %v586
        %v619 = vmax.f32 %v433, %v589
        %v620 = vmax.f32 %v438, %v594
        %v621 = vmax.f32 %v441, %v597
        %v622 = vmax.f32 %v446, %v602
        %v623 = vmax.f32 %v449, %v605
        %s624 = sadd.s32 0, 128
        %s625 = scalar_lea.vmem %s265, %s624
        %v626 = vld [vmem:[%s625] sm:$0xff]
        %v627 = vld [vmem:[%s625 + $0x8] sm:$0xff]
        %v628 = vld [vmem:[%s625 + $0x10] sm:$0xff]
        %v629 = vld [vmem:[%s625 + $0x18] sm:$0xff]
        %v630 = vld [vmem:[%s625 + $0x20] sm:$0xff]
        %v631 = vld [vmem:[%s625 + $0x28] sm:$0xff]
        %v632 = vld [vmem:[%s625 + $0x30] sm:$0xff]
        %v633 = vld [vmem:[%s625 + $0x38] sm:$0xff]
        %v634 = vpack.c.bf16 %v627, %v626
        %v635 = vpack.c.bf16 %v629, %v628
        %v636 = vpack.c.bf16 %v631, %v630
        %v637 = vpack.c.bf16 %v633, %v632
        %v639 = vsel %vm301, %v634, 0
        %v642 = vsel %vm301, %v635, 0
        %v645 = vsel %vm301, %v636, 0
        %v648 = vsel %vm301, %v637, 0
        %650 = vmatprep.subr.bf16.mxu0 0
        %651 = vmatpush1.bf16.msra.mxu0 %v299
        %652 = vmatprep.subr.bf16.mxu0 0
        %653 = vmatpush1.bf16.msra.mxu0 0
        %654 = vmatprep.subr.bf16.mxu0 0
        %655 = vmatpush1.bf16.msra.mxu0 0
        %656 = vmatprep.subr.bf16.mxu0 0
        %657 = vmatpush1.bf16.msra.mxu0 0
        %658 = vmatprep.subr.bf16.mxu0 0
        %659 = vmatpush1.bf16.msra.mxu0 0
        %660 = vmatprep.subr.bf16.mxu0 0
        %661 = vmatpush1.bf16.msra.mxu0 0
        %662 = vmatprep.subr.bf16.mxu0 0
        %663 = vmatpush1.bf16.msra.mxu0 0
        %664 = vmatprep.subr.bf16.mxu0 0
        %665 = vmatpush1.bf16.msra.mxu0 0
        %666 = vmatprep.subr.bf16.mxu0 0
        %667 = vmatpush1.bf16.msra.mxu0 0
        %668 = vmatprep.subr.bf16.mxu0 0
        %669 = vmatpush1.bf16.msra.mxu0 0
        %670 = vmatprep.subr.bf16.mxu0 0
        %671 = vmatpush1.bf16.msra.mxu0 0
        %672 = vmatprep.subr.bf16.mxu0 0
        %673 = vmatpush1.bf16.msra.mxu0 0
        %674 = vmatprep.subr.bf16.mxu0 0
        %675 = vmatpush1.bf16.msra.mxu0 0
        %676 = vmatprep.subr.bf16.mxu0 0
        %677 = vmatpush1.bf16.msra.mxu0 0
        %678 = vmatprep.subr.bf16.mxu0 0
        %679 = vmatpush1.bf16.msra.mxu0 0
        %680 = vmatprep.subr.bf16.mxu0 0
        %681 = vmatpush1.bf16.msra.mxu0 0
        %682 = vmatprep.mubr.bf16.mxu0 0
        %683 = vmatmul.mubr.bf16.gmra.mrb[0].mxu0 %v639
        %v684 = vpop.f32.mrb[0].mxu0
        %v685 = vadd.f32 0.0, %v684
        %v686 = vpop.f32.mrb[0].mxu0
        %v687 = vpop.f32.mrb[0].mxu0
        %v688 = vadd.f32 0.0, %v687
        %v689 = vpop.f32.mrb[0].mxu0
        %690 = vmatprep.mubr.bf16.mxu0 0
        %691 = vmatmul.mubr.bf16.gmra.mrb[0].mxu0 %v642
        %v692 = vpop.f32.mrb[0].mxu0
        %v693 = vadd.f32 0.0, %v692
        %v694 = vpop.f32.mrb[0].mxu0
        %v695 = vpop.f32.mrb[0].mxu0
        %v696 = vadd.f32 0.0, %v695
        %v697 = vpop.f32.mrb[0].mxu0
        %698 = vmatprep.mubr.bf16.mxu0 0
        %699 = vmatmul.mubr.bf16.gmra.mrb[0].mxu0 %v645
        %v700 = vpop.f32.mrb[0].mxu0
        %v701 = vadd.f32 0.0, %v700
        %v702 = vpop.f32.mrb[0].mxu0
        %v703 = vpop.f32.mrb[0].mxu0
        %v704 = vadd.f32 0.0, %v703
        %v705 = vpop.f32.mrb[0].mxu0
        %706 = vmatprep.mubr.bf16.mxu0 0
        %707 = vmatmul.mubr.bf16.gmra.mrb[0].mxu0 %v648
        %v708 = vpop.f32.mrb[0].mxu0
        %v709 = vadd.f32 0.0, %v708
        %v710 = vpop.f32.mrb[0].mxu0
        %v711 = vpop.f32.mrb[0].mxu0
        %v712 = vadd.f32 0.0, %v711
        %v713 = vpop.f32.mrb[0].mxu0
        %714 = vdwg.mxu0
        %715 = vmatprep.subr.bf16.mxu0 0
        %716 = vmatpush1.bf16.msra.mxu0 %v385
        %717 = vmatprep.subr.bf16.mxu0 0
        %718 = vmatpush1.bf16.msra.mxu0 0
        %719 = vmatprep.subr.bf16.mxu0 0
        %720 = vmatpush1.bf16.msra.mxu0 0
        %721 = vmatprep.subr.bf16.mxu0 0
        %722 = vmatpush1.bf16.msra.mxu0 0
        %723 = vmatprep.subr.bf16.mxu0 0
        %724 = vmatpush1.bf16.msra.mxu0 0
        %725 = vmatprep.subr.bf16.mxu0 0
        %726 = vmatpush1.bf16.msra.mxu0 0
        %727 = vmatprep.subr.bf16.mxu0 0
        %728 = vmatpush1.bf16.msra.mxu0 0
        %729 = vmatprep.subr.bf16.mxu0 0
        %730 = vmatpush1.bf16.msra.mxu0 0
        %731 = vmatprep.subr.bf16.mxu0 0
        %732 = vmatpush1.bf16.msra.mxu0 0
        %733 = vmatprep.subr.bf16.mxu0 0
        %734 = vmatpush1.bf16.msra.mxu0 0
        %735 = vmatprep.subr.bf16.mxu0 0
        %736 = vmatpush1.bf16.msra.mxu0 0
        %737 = vmatprep.subr.bf16.mxu0 0
        %738 = vmatpush1.bf16.msra.mxu0 0
        %739 = vmatprep.subr.bf16.mxu0 0
        %740 = vmatpush1.bf16.msra.mxu0 0
        %741 = vmatprep.subr.bf16.mxu0 0
        %742 = vmatpush1.bf16.msra.mxu0 0
        %743 = vmatprep.subr.bf16.mxu0 0
        %744 = vmatpush1.bf16.msra.mxu0 0
        %745 = vmatprep.subr.bf16.mxu0 0
        %746 = vmatpush1.bf16.msra.mxu0 0
        %747 = vmatprep.mubr.bf16.mxu0 0
        %748 = vmatmul.mubr.bf16.gmra.mrb[0].mxu0 %v639
        %v749 = vpop.f32.mrb[0].mxu0
        %v750 = vadd.f32 0.0, %v749
        %v751 = vpop.f32.mrb[0].mxu0
        %v752 = vpop.f32.mrb[0].mxu0
        %v753 = vadd.f32 0.0, %v752
        %v754 = vpop.f32.mrb[0].mxu0
        %755 = vmatprep.mubr.bf16.mxu0 0
        %756 = vmatmul.mubr.bf16.gmra.mrb[0].mxu0 %v642
        %v757 = vpop.f32.mrb[0].mxu0
        %v758 = vadd.f32 0.0, %v757
        %v759 = vpop.f32.mrb[0].mxu0
        %v760 = vpop.f32.mrb[0].mxu0
        %v761 = vadd.f32 0.0, %v760
        %v762 = vpop.f32.mrb[0].mxu0
        %763 = vmatprep.mubr.bf16.mxu0 0
        %764 = vmatmul.mubr.bf16.gmra.mrb[0].mxu0 %v645
        %v765 = vpop.f32.mrb[0].mxu0
        %v766 = vadd.f32 0.0, %v765
        %v767 = vpop.f32.mrb[0].mxu0
        %v768 = vpop.f32.mrb[0].mxu0
        %v769 = vadd.f32 0.0, %v768
        %v770 = vpop.f32.mrb[0].mxu0
        %771 = vmatprep.mubr.bf16.mxu0 0
        %772 = vmatmul.mubr.bf16.gmra.mrb[0].mxu0 %v648
        %v773 = vpop.f32.mrb[0].mxu0
        %v774 = vadd.f32 0.0, %v773
        %v775 = vpop.f32.mrb[0].mxu0
        %v776 = vpop.f32.mrb[0].mxu0
        %v777 = vadd.f32 0.0, %v776
        %v778 = vpop.f32.mrb[0].mxu0
        %779 = vdwg.mxu0
        %v780 = vmax.f32 %v608, %v685
        %v781 = vmax.f32 %v609, %v688
        %v782 = vmax.f32 %v610, %v693
        %v783 = vmax.f32 %v611, %v696
        %v784 = vmax.f32 %v612, %v701
        %v785 = vmax.f32 %v613, %v704
        %v786 = vmax.f32 %v614, %v709
        %v787 = vmax.f32 %v615, %v712
        %v788 = vmax.f32 %v616, %v750
        %v789 = vmax.f32 %v617, %v753
        %v790 = vmax.f32 %v618, %v758
        %v791 = vmax.f32 %v619, %v761
        %v792 = vmax.f32 %v620, %v766
        %v793 = vmax.f32 %v621, %v769
        %v794 = vmax.f32 %v622, %v774
        %v795 = vmax.f32 %v623, %v777
        %s796 = sadd.s32 0, 192
        %s797 = scalar_lea.vmem %s265, %s796
        %v798 = vld [vmem:[%s797] sm:$0xff]
        %v799 = vld [vmem:[%s797 + $0x8] sm:$0xff]
        %v800 = vld [vmem:[%s797 + $0x10] sm:$0xff]
        %v801 = vld [vmem:[%s797 + $0x18] sm:$0xff]
        %v802 = vld [vmem:[%s797 + $0x20] sm:$0xff]
        %v803 = vld [vmem:[%s797 + $0x28] sm:$0xff]
        %v804 = vld [vmem:[%s797 + $0x30] sm:$0xff]
        %v805 = vld [vmem:[%s797 + $0x38] sm:$0xff]
        %v806 = vpack.c.bf16 %v799, %v798
        %v807 = vpack.c.bf16 %v801, %v800
        %v808 = vpack.c.bf16 %v803, %v802
        %v809 = vpack.c.bf16 %v805, %v804
        %v811 = vsel %vm301, %v806, 0
        %v814 = vsel %vm301, %v807, 0
        %v817 = vsel %vm301, %v808, 0
        %v820 = vsel %vm301, %v809, 0
        %822 = vmatprep.subr.bf16.mxu0 0
        %823 = vmatpush1.bf16.msra.mxu0 %v299
        %824 = vmatprep.subr.bf16.mxu0 0
        %825 = vmatpush1.bf16.msra.mxu0 0
        %826 = vmatprep.subr.bf16.mxu0 0
        %827 = vmatpush1.bf16.msra.mxu0 0
        %828 = vmatprep.subr.bf16.mxu0 0
        %829 = vmatpush1.bf16.msra.mxu0 0
        %830 = vmatprep.subr.bf16.mxu0 0
        %831 = vmatpush1.bf16.msra.mxu0 0
        %832 = vmatprep.subr.bf16.mxu0 0
        %833 = vmatpush1.bf16.msra.mxu0 0
        %834 = vmatprep.subr.bf16.mxu0 0
        %835 = vmatpush1.bf16.msra.mxu0 0
        %836 = vmatprep.subr.bf16.mxu0 0
        %837 = vmatpush1.bf16.msra.mxu0 0
        %838 = vmatprep.subr.bf16.mxu0 0
        %839 = vmatpush1.bf16.msra.mxu0 0
        %840 = vmatprep.subr.bf16.mxu0 0
        %841 = vmatpush1.bf16.msra.mxu0 0
        %842 = vmatprep.subr.bf16.mxu0 0
        %843 = vmatpush1.bf16.msra.mxu0 0
        %844 = vmatprep.subr.bf16.mxu0 0
        %845 = vmatpush1.bf16.msra.mxu0 0
        %846 = vmatprep.subr.bf16.mxu0 0
        %847 = vmatpush1.bf16.msra.mxu0 0
        %848 = vmatprep.subr.bf16.mxu0 0
        %849 = vmatpush1.bf16.msra.mxu0 0
        %850 = vmatprep.subr.bf16.mxu0 0
        %851 = vmatpush1.bf16.msra.mxu0 0
        %852 = vmatprep.subr.bf16.mxu0 0
        %853 = vmatpush1.bf16.msra.mxu0 0
        %854 = vmatprep.mubr.bf16.mxu0 0
        %855 = vmatmul.mubr.bf16.gmra.mrb[0].mxu0 %v811
        %v856 = vpop.f32.mrb[0].mxu0
        %v857 = vadd.f32 0.0, %v856
        %v858 = vpop.f32.mrb[0].mxu0
        %v859 = vpop.f32.mrb[0].mxu0
        %v860 = vadd.f32 0.0, %v859
        %v861 = vpop.f32.mrb[0].mxu0
        %862 = vmatprep.mubr.bf16.mxu0 0
        %863 = vmatmul.mubr.bf16.gmra.mrb[0].mxu0 %v814
        %v864 = vpop.f32.mrb[0].mxu0
        %v865 = vadd.f32 0.0, %v864
        %v866 = vpop.f32.mrb[0].mxu0
        %v867 = vpop.f32.mrb[0].mxu0
        %v868 = vadd.f32 0.0, %v867
        %v869 = vpop.f32.mrb[0].mxu0
        %870 = vmatprep.mubr.bf16.mxu0 0
        %871 = vmatmul.mubr.bf16.gmra.mrb[0].mxu0 %v817
        %v872 = vpop.f32.mrb[0].mxu0
        %v873 = vadd.f32 0.0, %v872
        %v874 = vpop.f32.mrb[0].mxu0
        %v875 = vpop.f32.mrb[0].mxu0
        %v876 = vadd.f32 0.0, %v875
        %v877 = vpop.f32.mrb[0].mxu0
        %878 = vmatprep.mubr.bf16.mxu0 0
        %879 = vmatmul.mubr.bf16.gmra.mrb[0].mxu0 %v820
        %v880 = vpop.f32.mrb[0].mxu0
        %v881 = vadd.f32 0.0, %v880
        %v882 = vpop.f32.mrb[0].mxu0
        %v883 = vpop.f32.mrb[0].mxu0
        %v884 = vadd.f32 0.0, %v883
        %v885 = vpop.f32.mrb[0].mxu0
        %886 = vdwg.mxu0
        %887 = vmatprep.subr.bf16.mxu0 0
        %888 = vmatpush1.bf16.msra.mxu0 %v385
        %889 = vmatprep.subr.bf16.mxu0 0
        %890 = vmatpush1.bf16.msra.mxu0 0
        %891 = vmatprep.subr.bf16.mxu0 0
        %892 = vmatpush1.bf16.msra.mxu0 0
        %893 = vmatprep.subr.bf16.mxu0 0
        %894 = vmatpush1.bf16.msra.mxu0 0
        %895 = vmatprep.subr.bf16.mxu0 0
        %896 = vmatpush1.bf16.msra.mxu0 0
        %897 = vmatprep.subr.bf16.mxu0 0
        %898 = vmatpush1.bf16.msra.mxu0 0
        %899 = vmatprep.subr.bf16.mxu0 0
        %900 = vmatpush1.bf16.msra.mxu0 0
        %901 = vmatprep.subr.bf16.mxu0 0
        %902 = vmatpush1.bf16.msra.mxu0 0
        %903 = vmatprep.subr.bf16.mxu0 0
        %904 = vmatpush1.bf16.msra.mxu0 0
        %905 = vmatprep.subr.bf16.mxu0 0
        %906 = vmatpush1.bf16.msra.mxu0 0
        %907 = vmatprep.subr.bf16.mxu0 0
        %908 = vmatpush1.bf16.msra.mxu0 0
        %909 = vmatprep.subr.bf16.mxu0 0
        %910 = vmatpush1.bf16.msra.mxu0 0
        %911 = vmatprep.subr.bf16.mxu0 0
        %912 = vmatpush1.bf16.msra.mxu0 0
        %913 = vmatprep.subr.bf16.mxu0 0
        %914 = vmatpush1.bf16.msra.mxu0 0
        %915 = vmatprep.subr.bf16.mxu0 0
        %916 = vmatpush1.bf16.msra.mxu0 0
        %917 = vmatprep.subr.bf16.mxu0 0
        %918 = vmatpush1.bf16.msra.mxu0 0
        %919 = vmatprep.mubr.bf16.mxu0 0
        %920 = vmatmul.mubr.bf16.gmra.mrb[0].mxu0 %v811
        %v921 = vpop.f32.mrb[0].mxu0
        %v922 = vadd.f32 0.0, %v921
        %v923 = vpop.f32.mrb[0].mxu0
        %v924 = vpop.f32.mrb[0].mxu0
        %v925 = vadd.f32 0.0, %v924
        %v926 = vpop.f32.mrb[0].mxu0
        %927 = vmatprep.mubr.bf16.mxu0 0
        %928 = vmatmul.mubr.bf16.gmra.mrb[0].mxu0 %v814
        %v929 = vpop.f32.mrb[0].mxu0
        %v930 = vadd.f32 0.0, %v929
        %v931 = vpop.f32.mrb[0].mxu0
        %v932 = vpop.f32.mrb[0].mxu0
        %v933 = vadd.f32 0.0, %v932
        %v934 = vpop.f32.mrb[0].mxu0
        %935 = vmatprep.mubr.bf16.mxu0 0
        %936 = vmatmul.mubr.bf16.gmra.mrb[0].mxu0 %v817
        %v937 = vpop.f32.mrb[0].mxu0
        %v938 = vadd.f32 0.0, %v937
        %v939 = vpop.f32.mrb[0].mxu0
        %v940 = vpop.f32.mrb[0].mxu0
        %v941 = vadd.f32 0.0, %v940
        %v942 = vpop.f32.mrb[0].mxu0
        %943 = vmatprep.mubr.bf16.mxu0 0
        %944 = vmatmul.mubr.bf16.gmra.mrb[0].mxu0 %v820
        %v945 = vpop.f32.mrb[0].mxu0
        %v946 = vadd.f32 0.0, %v945
        %v947 = vpop.f32.mrb[0].mxu0
        %v948 = vpop.f32.mrb[0].mxu0
        %v949 = vadd.f32 0.0, %v948
        %v950 = vpop.f32.mrb[0].mxu0
        %951 = vdwg.mxu0
        %v952 = vmax.f32 %v780, %v857
        %v953 = vmax.f32 %v781, %v860
        %v954 = vmax.f32 %v782, %v865
        %v955 = vmax.f32 %v783, %v868
        %v956 = vmax.f32 %v784, %v873
        %v957 = vmax.f32 %v785, %v876
        %v958 = vmax.f32 %v786, %v881
        %v959 = vmax.f32 %v787, %v884
        %v960 = vmax.f32 %v788, %v922
        %v961 = vmax.f32 %v789, %v925
        %v962 = vmax.f32 %v790, %v930
        %v963 = vmax.f32 %v791, %v933
        %v964 = vmax.f32 %v792, %v938
        %v965 = vmax.f32 %v793, %v941
        %v966 = vmax.f32 %v794, %v946
        %v967 = vmax.f32 %v795, %v949
        %v968 = vpack.c.bf16 %v953, %v952
        %v969 = vpack.c.bf16 %v955, %v954
        %v970 = vpack.c.bf16 %v957, %v956
        %v971 = vpack.c.bf16 %v959, %v958
        %vm972 = vcmask 15360
        %973 = vst.msk [vmem:[#allocation2] sm:$0xff] %vm972, %v968
        %974 = vst.msk [vmem:[#allocation2 + $0x8] sm:$0xff] %vm972, %v969
        %975 = vst.msk [vmem:[#allocation2 + $0x10] sm:$0xff] %vm972, %v970
        %976 = vst.msk [vmem:[#allocation2 + $0x18] sm:$0xff] %vm972, %v971
        %v977 = vpack.c.bf16 %v961, %v960
        %v978 = vpack.c.bf16 %v963, %v962
        %v979 = vpack.c.bf16 %v965, %v964
        %v980 = vpack.c.bf16 %v967, %v966
        %vm981 = vcmask 64512
        %982 = vst.msk [vmem:[#allocation3] sm:$0xff] %vm981, %v977
        %983 = vst.msk [vmem:[#allocation3 + $0x8] sm:$0xff] %vm981, %v978
        %984 = vst.msk [vmem:[#allocation3 + $0x10] sm:$0xff] %vm981, %v979
        %985 = vst.msk [vmem:[#allocation3 + $0x18] sm:$0xff] %vm981, %v980
      $region48: #{tpu_custom_call.1} parent=43 // pred_fallthru
        _
      %s986 = smul.u32 %s23, 256
      %s987 = scalar_lea.vmem %s265, %s986
      %v988 = vld [vmem:[%s987] sm:$0xff]
      %v989 = vld [vmem:[%s987 + $0x8] sm:$0xff]
      %v990 = vld [vmem:[%s987 + $0x10] sm:$0xff]
      %v991 = vld [vmem:[%s987 + $0x18] sm:$0xff]
      %v992 = vld [vmem:[%s987 + $0x20] sm:$0xff]
      %v993 = vld [vmem:[%s987 + $0x28] sm:$0xff]
      %v994 = vld [vmem:[%s987 + $0x30] sm:$0xff]
      %v995 = vld [vmem:[%s987 + $0x38] sm:$0xff]
      %v996 = vld [vmem:[%s987 + $0x40] sm:$0xff]
      %v997 = vld [vmem:[%s987 + $0x48] sm:$0xff]
      %v998 = vld [vmem:[%s987 + $0x50] sm:$0xff]
      %v999 = vld [vmem:[%s987 + $0x58] sm:$0xff]
      %v1000 = vld [vmem:[%s987 + $0x60] sm:$0xff]
      %v1001 = vld [vmem:[%s987 + $0x68] sm:$0xff]
      %v1002 = vld [vmem:[%s987 + $0x70] sm:$0xff]
      %v1003 = vld [vmem:[%s987 + $0x78] sm:$0xff]
      %v1004 = vld [vmem:[%s987 + $0x80] sm:$0xff]
      %v1005 = vld [vmem:[%s987 + $0x88] sm:$0xff]
      %v1006 = vld [vmem:[%s987 + $0x90] sm:$0xff]
      %v1007 = vld [vmem:[%s987 + $0x98] sm:$0xff]
      %v1008 = vld [vmem:[%s987 + $0xa0] sm:$0xff]
      %v1009 = vld [vmem:[%s987 + $0xa8] sm:$0xff]
      %v1010 = vld [vmem:[%s987 + $0xb0] sm:$0xff]
      %v1011 = vld [vmem:[%s987 + $0xb8] sm:$0xff]
      %v1012 = vld [vmem:[%s987 + $0xc0] sm:$0xff]
      %v1013 = vld [vmem:[%s987 + $0xc8] sm:$0xff]
      %v1014 = vld [vmem:[%s987 + $0xd0] sm:$0xff]
      %v1015 = vld [vmem:[%s987 + $0xd8] sm:$0xff]
      %v1016 = vld [vmem:[%s987 + $0xe0] sm:$0xff]
      %v1017 = vld [vmem:[%s987 + $0xe8] sm:$0xff]
      %v1018 = vld [vmem:[%s987 + $0xf0] sm:$0xff]
      %v1019 = vld [vmem:[%s987 + $0xf8] sm:$0xff]
      %v1020 = vpack.c.bf16 %v989, %v988
      %v1021 = vpack.c.bf16 %v991, %v990
      %v1022 = vpack.c.bf16 %v993, %v992
      %v1023 = vpack.c.bf16 %v995, %v994
      %v1024 = vpack.c.bf16 %v997, %v996
      %v1025 = vpack.c.bf16 %v999, %v998
      %v1026 = vpack.c.bf16 %v1001, %v1000
      %v1027 = vpack.c.bf16 %v1003, %v1002
      %v1028 = vpack.c.bf16 %v1005, %v1004
      %v1029 = vpack.c.bf16 %v1007, %v1006
      %v1030 = vpack.c.bf16 %v1009, %v1008
      %v1031 = vpack.c.bf16 %v1011, %v1010
      %v1032 = vpack.c.bf16 %v1013, %v1012
      %v1033 = vpack.c.bf16 %v1015, %v1014
      %v1034 = vpack.c.bf16 %v1017, %v1016
      %v1035 = vpack.c.bf16 %v1019, %v1018
      %v1036 = vld [vmem:[%s1] sm:$0xf]
      %v1037 = vld [vmem:[%s1 + $0x4] sm:$0xf]
      %v1040 = vunpack.c.l.b16 %v1036
      %v1041 = vunpack.c.l.b16 %v1037
      %v1042 = vpack.c.b16 %v1041, %v1040
      %vm1044 = vcmask 130048
      %v1046 = vsel %vm1044, %v1020, 0
      %v1049 = vsel %vm1044, %v1021, 0
      %v1052 = vsel %vm1044, %v1022, 0
      %v1055 = vsel %vm1044, %v1023, 0
      %v1058 = vsel %vm1044, %v1024, 0
      %v1061 = vsel %vm1044, %v1025, 0
      %v1064 = vsel %vm1044, %v1026, 0
      %v1067 = vsel %vm1044, %v1027, 0
      %v1070 = vsel %vm1044, %v1028, 0
      %v1073 = vsel %vm1044, %v1029, 0
      %v1076 = vsel %vm1044, %v1030, 0
      %v1079 = vsel %vm1044, %v1031, 0
      %v1082 = vsel %vm1044, %v1032, 0
      %v1085 = vsel %vm1044, %v1033, 0
      %v1088 = vsel %vm1044, %v1034, 0
      %v1091 = vsel %vm1044, %v1035, 0
      %1093 = vmatprep.subr.bf16.mxu0 0
      %1094 = vmatpush1.bf16.msra.mxu0 %v1042
      %1095 = vmatprep.subr.bf16.mxu0 0
      %1096 = vmatpush1.bf16.msra.mxu0 0
      %1097 = vmatprep.subr.bf16.mxu0 0
      %1098 = vmatpush1.bf16.msra.mxu0 0
      %1099 = vmatprep.subr.bf16.mxu0 0
      %1100 = vmatpush1.bf16.msra.mxu0 0
      %1101 = vmatprep.subr.bf16.mxu0 0
      %1102 = vmatpush1.bf16.msra.mxu0 0
      %1103 = vmatprep.subr.bf16.mxu0 0
      %1104 = vmatpush1.bf16.msra.mxu0 0
      %1105 = vmatprep.subr.bf16.mxu0 0
      %1106 = vmatpush1.bf16.msra.mxu0 0
      %1107 = vmatprep.subr.bf16.mxu0 0
      %1108 = vmatpush1.bf16.msra.mxu0 0
      %1109 = vmatprep.subr.bf16.mxu0 0
      %1110 = vmatpush1.bf16.msra.mxu0 0
      %1111 = vmatprep.subr.bf16.mxu0 0
      %1112 = vmatpush1.bf16.msra.mxu0 0
      %1113 = vmatprep.subr.bf16.mxu0 0
      %1114 = vmatpush1.bf16.msra.mxu0 0
      %1115 = vmatprep.subr.bf16.mxu0 0
      %1116 = vmatpush1.bf16.msra.mxu0 0
      %1117 = vmatprep.subr.bf16.mxu0 0
      %1118 = vmatpush1.bf16.msra.mxu0 0
      %1119 = vmatprep.subr.bf16.mxu0 0
      %1120 = vmatpush1.bf16.msra.mxu0 0
      %1121 = vmatprep.subr.bf16.mxu0 0
      %1122 = vmatpush1.bf16.msra.mxu0 0
      %1123 = vmatprep.subr.bf16.mxu0 0
      %1124 = vmatpush1.bf16.msra.mxu0 0
      %1125 = vmatprep.mubr.bf16.mxu0 0
      %1126 = vmatmul.mubr.bf16.gmra.mrb[0].mxu0 %v1046
      %v1127 = vpop.f32.mrb[0].mxu0
      %v1128 = vadd.f32 0.0, %v1127
      %v1129 = vpop.f32.mrb[0].mxu0
      %v1130 = vpop.f32.mrb[0].mxu0
      %v1131 = vadd.f32 0.0, %v1130
      %v1132 = vpop.f32.mrb[0].mxu0
      %1133 = vmatprep.mubr.bf16.mxu0 0
      %1134 = vmatmul.mubr.bf16.gmra.mrb[0].mxu0 %v1049
      %v1135 = vpop.f32.mrb[0].mxu0
      %v1136 = vadd.f32 0.0, %v1135
      %v1137 = vpop.f32.mrb[0].mxu0
      %v1138 = vpop.f32.mrb[0].mxu0
      %v1139 = vadd.f32 0.0, %v1138
      %v1140 = vpop.f32.mrb[0].mxu0
      %1141 = vmatprep.mubr.bf16.mxu0 0
      %1142 = vmatmul.mubr.bf16.gmra.mrb[0].mxu0 %v1052
      %v1143 = vpop.f32.mrb[0].mxu0
      %v1144 = vadd.f32 0.0, %v1143
      %v1145 = vpop.f32.mrb[0].mxu0
      %v1146 = vpop.f32.mrb[0].mxu0
      %v1147 = vadd.f32 0.0, %v1146
      %v1148 = vpop.f32.mrb[0].mxu0
      %1149 = vmatprep.mubr.bf16.mxu0 0
      %1150 = vmatmul.mubr.bf16.gmra.mrb[0].mxu0 %v1055
      %v1151 = vpop.f32.mrb[0].mxu0
      %v1152 = vadd.f32 0.0, %v1151
      %v1153 = vpop.f32.mrb[0].mxu0
      %v1154 = vpop.f32.mrb[0].mxu0
      %v1155 = vadd.f32 0.0, %v1154
      %v1156 = vpop.f32.mrb[0].mxu0
      %1157 = vmatprep.mubr.bf16.mxu0 0
      %1158 = vmatmul.mubr.bf16.gmra.mrb[0].mxu0 %v1058
      %v1159 = vpop.f32.mrb[0].mxu0
      %v1160 = vadd.f32 0.0, %v1159
      %v1161 = vpop.f32.mrb[0].mxu0
      %v1162 = vpop.f32.mrb[0].mxu0
      %v1163 = vadd.f32 0.0, %v1162
      %v1164 = vpop.f32.mrb[0].mxu0
      %1165 = vmatprep.mubr.bf16.mxu0 0
      %1166 = vmatmul.mubr.bf16.gmra.mrb[0].mxu0 %v1061
      %v1167 = vpop.f32.mrb[0].mxu0
      %v1168 = vadd.f32 0.0, %v1167
      %v1169 = vpop.f32.mrb[0].mxu0
      %v1170 = vpop.f32.mrb[0].mxu0
      %v1171 = vadd.f32 0.0, %v1170
      %v1172 = vpop.f32.mrb[0].mxu0
      %1173 = vmatprep.mubr.bf16.mxu0 0
      %1174 = vmatmul.mubr.bf16.gmra.mrb[0].mxu0 %v1064
      %v1175 = vpop.f32.mrb[0].mxu0
      %v1176 = vadd.f32 0.0, %v1175
      %v1177 = vpop.f32.mrb[0].mxu0
      %v1178 = vpop.f32.mrb[0].mxu0
      %v1179 = vadd.f32 0.0, %v1178
      %v1180 = vpop.f32.mrb[0].mxu0
      %1181 = vmatprep.mubr.bf16.mxu0 0
      %1182 = vmatmul.mubr.bf16.gmra.mrb[0].mxu0 %v1067
      %v1183 = vpop.f32.mrb[0].mxu0
      %v1184 = vadd.f32 0.0, %v1183
      %v1185 = vpop.f32.mrb[0].mxu0
      %v1186 = vpop.f32.mrb[0].mxu0
      %v1187 = vadd.f32 0.0, %v1186
      %v1188 = vpop.f32.mrb[0].mxu0
      %1189 = vmatprep.mubr.bf16.mxu0 0
      %1190 = vmatmul.mubr.bf16.gmra.mrb[0].mxu0 %v1070
      %v1191 = vpop.f32.mrb[0].mxu0
      %v1192 = vadd.f32 0.0, %v1191
      %v1193 = vpop.f32.mrb[0].mxu0
      %v1194 = vpop.f32.mrb[0].mxu0
      %v1195 = vadd.f32 0.0, %v1194
      %v1196 = vpop.f32.mrb[0].mxu0
      %1197 = vmatprep.mubr.bf16.mxu0 0
      %1198 = vmatmul.mubr.bf16.gmra.mrb[0].mxu0 %v1073
      %v1199 = vpop.f32.mrb[0].mxu0
      %v1200 = vadd.f32 0.0, %v1199
      %v1201 = vpop.f32.mrb[0].mxu0
      %v1202 = vpop.f32.mrb[0].mxu0
      %v1203 = vadd.f32 0.0, %v1202
      %v1204 = vpop.f32.mrb[0].mxu0
      %1205 = vmatprep.mubr.bf16.mxu0 0
      %1206 = vmatmul.mubr.bf16.gmra.mrb[0].mxu0 %v1076
      %v1207 = vpop.f32.mrb[0].mxu0
      %v1208 = vadd.f32 0.0, %v1207
      %v1209 = vpop.f32.mrb[0].mxu0
      %v1210 = vpop.f32.mrb[0].mxu0
      %v1211 = vadd.f32 0.0, %v1210
      %v1212 = vpop.f32.mrb[0].mxu0
      %1213 = vmatprep.mubr.bf16.mxu0 0
      %1214 = vmatmul.mubr.bf16.gmra.mrb[0].mxu0 %v1079
      %v1215 = vpop.f32.mrb[0].mxu0
      %v1216 = vadd.f32 0.0, %v1215
      %v1217 = vpop.f32.mrb[0].mxu0
      %v1218 = vpop.f32.mrb[0].mxu0
      %v1219 = vadd.f32 0.0, %v1218
      %v1220 = vpop.f32.mrb[0].mxu0
      %1221 = vmatprep.mubr.bf16.mxu0 0
      %1222 = vmatmul.mubr.bf16.gmra.mrb[0].mxu0 %v1082
      %v1223 = vpop.f32.mrb[0].mxu0
      %v1224 = vadd.f32 0.0, %v1223
      %v1225 = vpop.f32.mrb[0].mxu0
      %v1226 = vpop.f32.mrb[0].mxu0
      %v1227 = vadd.f32 0.0, %v1226
      %v1228 = vpop.f32.mrb[0].mxu0
      %1229 = vmatprep.mubr.bf16.mxu0 0
      %1230 = vmatmul.mubr.bf16.gmra.mrb[0].mxu0 %v1085
      %v1231 = vpop.f32.mrb[0].mxu0
      %v1232 = vadd.f32 0.0, %v1231
      %v1233 = vpop.f32.mrb[0].mxu0
      %v1234 = vpop.f32.mrb[0].mxu0
      %v1235 = vadd.f32 0.0, %v1234
      %v1236 = vpop.f32.mrb[0].mxu0
      %1237 = vmatprep.mubr.bf16.mxu0 0
      %1238 = vmatmul.mubr.bf16.gmra.mrb[0].mxu0 %v1088
      %v1239 = vpop.f32.mrb[0].mxu0
      %v1240 = vadd.f32 0.0, %v1239
      %v1241 = vpop.f32.mrb[0].mxu0
      %v1242 = vpop.f32.mrb[0].mxu0
      %v1243 = vadd.f32 0.0, %v1242
      %v1244 = vpop.f32.mrb[0].mxu0
      %1245 = vmatprep.mubr.bf16.mxu0 0
      %1246 = vmatmul.mubr.bf16.gmra.mrb[0].mxu0 %v1091
      %v1247 = vpop.f32.mrb[0].mxu0
      %v1248 = vadd.f32 0.0, %v1247
      %v1249 = vpop.f32.mrb[0].mxu0
      %v1250 = vpop.f32.mrb[0].mxu0
      %v1251 = vadd.f32 0.0, %v1250
      %v1252 = vpop.f32.mrb[0].mxu0
      %1253 = vdwg.mxu0
      %v1254 = vpack.c.bf16 %v1131, %v1128
      %v1255 = vpack.c.bf16 %v1139, %v1136
      %v1256 = vpack.c.bf16 %v1147, %v1144
      %v1257 = vpack.c.bf16 %v1155, %v1152
      %v1258 = vpack.c.bf16 %v1163, %v1160
      %v1259 = vpack.c.bf16 %v1171, %v1168
      %v1260 = vpack.c.bf16 %v1179, %v1176
      %v1261 = vpack.c.bf16 %v1187, %v1184
      %v1262 = vpack.c.bf16 %v1195, %v1192
      %v1263 = vpack.c.bf16 %v1203, %v1200
      %v1264 = vpack.c.bf16 %v1211, %v1208
      %v1265 = vpack.c.bf16 %v1219, %v1216
      %v1266 = vpack.c.bf16 %v1227, %v1224
      %v1267 = vpack.c.bf16 %v1235, %v1232
      %v1268 = vpack.c.bf16 %v1243, %v1240
      %v1269 = vpack.c.bf16 %v1251, %v1248
      %v1270 = vld [vmem:[#allocation2] sm:$0xff]
      %v1271 = vld [vmem:[#allocation2 + $0x8] sm:$0xff]
      %v1272 = vld [vmem:[#allocation2 + $0x10] sm:$0xff]
      %v1273 = vld [vmem:[#allocation2 + $0x18] sm:$0xff]
      %v1274 = vld [vmem:[#allocation3] sm:$0xff]
      %v1275 = vld [vmem:[#allocation3 + $0x8] sm:$0xff]
      %v1276 = vld [vmem:[#allocation3 + $0x10] sm:$0xff]
      %v1277 = vld [vmem:[#allocation3 + $0x18] sm:$0xff]
      %vm1278 = vcmask 15360
      %v1280 = vsel %vm1278, %v1254, 0
      %v1283 = vsel %vm1278, %v1255, 0
      %v1286 = vsel %vm1278, %v1256, 0
      %v1289 = vsel %vm1278, %v1257, 0
      %v1292 = vsel %vm1278, %v1258, 0
      %v1295 = vsel %vm1278, %v1259, 0
      %v1298 = vsel %vm1278, %v1260, 0
      %v1301 = vsel %vm1278, %v1261, 0
      %v1304 = vsel %vm1278, %v1262, 0
      %v1307 = vsel %vm1278, %v1263, 0
      %v1310 = vsel %vm1278, %v1264, 0
      %v1313 = vsel %vm1278, %v1265, 0
      %v1316 = vsel %vm1278, %v1266, 0
      %v1319 = vsel %vm1278, %v1267, 0
      %v1322 = vsel %vm1278, %v1268, 0
      %v1325 = vsel %vm1278, %v1269, 0
      %v1328 = vsel %vm1278, %v1270, 0
      %v1331 = vsel %vm1278, %v1271, 0
      %v1334 = vsel %vm1278, %v1272, 0
      %v1337 = vsel %vm1278, %v1273, 0
      %1339 = vmatprep.subr.bf16.mxu0 0
      %1340 = vmatpush1.bf16.xpose.msra.mxu0 %v1328
      %1341 = vmatprep.subr.bf16.mxu0 0
      %1342 = vmatpush1.bf16.xpose.msra.mxu0 %v1331
      %1343 = vmatprep.subr.bf16.mxu0 0
      %1344 = vmatpush1.bf16.xpose.msra.mxu0 %v1334
      %1345 = vmatprep.subr.bf16.mxu0 0
      %1346 = vmatpush1.bf16.xpose.msra.mxu0 %v1337
      %1347 = vmatprep.subr.bf16.mxu0 0
      %1348 = vmatpush1.bf16.xpose.msra.mxu0 0
      %1349 = vmatprep.subr.bf16.mxu0 0
      %1350 = vmatpush1.bf16.xpose.msra.mxu0 0
      %1351 = vmatprep.subr.bf16.mxu0 0
      %1352 = vmatpush1.bf16.xpose.msra.mxu0 0
      %1353 = vmatprep.subr.bf16.mxu0 0
      %1354 = vmatpush1.bf16.xpose.msra.mxu0 0
      %1355 = vmatprep.subr.bf16.mxu0 0
      %1356 = vmatpush1.bf16.xpose.msra.mxu0 0
      %1357 = vmatprep.subr.bf16.mxu0 0
      %1358 = vmatpush1.bf16.xpose.msra.mxu0 0
      %1359 = vmatprep.subr.bf16.mxu0 0
      %1360 = vmatpush1.bf16.xpose.msra.mxu0 0
      %1361 = vmatprep.subr.bf16.mxu0 0
      %1362 = vmatpush1.bf16.xpose.msra.mxu0 0
      %1363 = vmatprep.subr.bf16.mxu0 0
      %1364 = vmatpush1.bf16.xpose.msra.mxu0 0
      %1365 = vmatprep.subr.bf16.mxu0 0
      %1366 = vmatpush1.bf16.xpose.msra.mxu0 0
      %1367 = vmatprep.subr.bf16.mxu0 0
      %1368 = vmatpush1.bf16.xpose.msra.mxu0 0
      %1369 = vmatprep.subr.bf16.mxu0 0
      %1370 = vmatpush1.bf16.xpose.msra.mxu0 0
      %1371 = vmatprep.mubr.bf16.mxu0 0
      %1372 = vmatmul.mubr.bf16.gmra.mrb[0].mxu0 %v1280
      %v1373 = vpop.f32.mrb[0].mxu0
      %v1374 = vadd.f32 0.0, %v1373
      %v1375 = vpop.f32.mrb[0].mxu0
      %v1376 = vpop.f32.mrb[0].mxu0
      %v1377 = vadd.f32 0.0, %v1376
      %v1378 = vpop.f32.mrb[0].mxu0
      %1379 = vmatprep.mubr.bf16.mxu0 0
      %1380 = vmatmul.mubr.bf16.gmra.mrb[0].mxu0 %v1283
      %v1381 = vpop.f32.mrb[0].mxu0
      %v1382 = vadd.f32 0.0, %v1381
      %v1383 = vpop.f32.mrb[0].mxu0
      %v1384 = vpop.f32.mrb[0].mxu0
      %v1385 = vadd.f32 0.0, %v1384
      %v1386 = vpop.f32.mrb[0].mxu0
      %1387 = vmatprep.mubr.bf16.mxu0 0
      %1388 = vmatmul.mubr.bf16.gmra.mrb[0].mxu0 %v1286
      %v1389 = vpop.f32.mrb[0].mxu0
      %v1390 = vadd.f32 0.0, %v1389
      %v1391 = vpop.f32.mrb[0].mxu0
      %v1392 = vpop.f32.mrb[0].mxu0
      %v1393 = vadd.f32 0.0, %v1392
      %v1394 = vpop.f32.mrb[0].mxu0
      %1395 = vmatprep.mubr.bf16.mxu0 0
      %1396 = vmatmul.mubr.bf16.gmra.mrb[0].mxu0 %v1289
      %v1397 = vpop.f32.mrb[0].mxu0
      %v1398 = vadd.f32 0.0, %v1397
      %v1399 = vpop.f32.mrb[0].mxu0
      %v1400 = vpop.f32.mrb[0].mxu0
      %v1401 = vadd.f32 0.0, %v1400
      %v1402 = vpop.f32.mrb[0].mxu0
      %1403 = vmatprep.mubr.bf16.mxu0 0
      %1404 = vmatmul.mubr.bf16.gmra.mrb[0].mxu0 %v1292
      %v1405 = vpop.f32.mrb[0].mxu0
      %v1406 = vadd.f32 0.0, %v1405
      %v1407 = vpop.f32.mrb[0].mxu0
      %v1408 = vpop.f32.mrb[0].mxu0
      %v1409 = vadd.f32 0.0, %v1408
      %v1410 = vpop.f32.mrb[0].mxu0
      %1411 = vmatprep.mubr.bf16.mxu0 0
      %1412 = vmatmul.mubr.bf16.gmra.mrb[0].mxu0 %v1295
      %v1413 = vpop.f32.mrb[0].mxu0
      %v1414 = vadd.f32 0.0, %v1413
      %v1415 = vpop.f32.mrb[0].mxu0
      %v1416 = vpop.f32.mrb[0].mxu0
      %v1417 = vadd.f32 0.0, %v1416
      %v1418 = vpop.f32.mrb[0].mxu0
      %1419 = vmatprep.mubr.bf16.mxu0 0
      %1420 = vmatmul.mubr.bf16.gmra.mrb[0].mxu0 %v1298
      %v1421 = vpop.f32.mrb[0].mxu0
      %v1422 = vadd.f32 0.0, %v1421
      %v1423 = vpop.f32.mrb[0].mxu0
      %v1424 = vpop.f32.mrb[0].mxu0
      %v1425 = vadd.f32 0.0, %v1424
      %v1426 = vpop.f32.mrb[0].mxu0
      %1427 = vmatprep.mubr.bf16.mxu0 0
      %1428 = vmatmul.mubr.bf16.gmra.mrb[0].mxu0 %v1301
      %v1429 = vpop.f32.mrb[0].mxu0
      %v1430 = vadd.f32 0.0, %v1429
      %v1431 = vpop.f32.mrb[0].mxu0
      %v1432 = vpop.f32.mrb[0].mxu0
      %v1433 = vadd.f32 0.0, %v1432
      %v1434 = vpop.f32.mrb[0].mxu0
      %1435 = vmatprep.mubr.bf16.mxu0 0
      %1436 = vmatmul.mubr.bf16.gmra.mrb[0].mxu0 %v1304
      %v1437 = vpop.f32.mrb[0].mxu0
      %v1438 = vadd.f32 0.0, %v1437
      %v1439 = vpop.f32.mrb[0].mxu0
      %v1440 = vpop.f32.mrb[0].mxu0
      %v1441 = vadd.f32 0.0, %v1440
      %v1442 = vpop.f32.mrb[0].mxu0
      %1443 = vmatprep.mubr.bf16.mxu0 0
      %1444 = vmatmul.mubr.bf16.gmra.mrb[0].mxu0 %v1307
      %v1445 = vpop.f32.mrb[0].mxu0
      %v1446 = vadd.f32 0.0, %v1445
      %v1447 = vpop.f32.mrb[0].mxu0
      %v1448 = vpop.f32.mrb[0].mxu0
      %v1449 = vadd.f32 0.0, %v1448
      %v1450 = vpop.f32.mrb[0].mxu0
      %1451 = vmatprep.mubr.bf16.mxu0 0
      %1452 = vmatmul.mubr.bf16.gmra.mrb[0].mxu0 %v1310
      %v1453 = vpop.f32.mrb[0].mxu0
      %v1454 = vadd.f32 0.0, %v1453
      %v1455 = vpop.f32.mrb[0].mxu0
      %v1456 = vpop.f32.mrb[0].mxu0
      %v1457 = vadd.f32 0.0, %v1456
      %v1458 = vpop.f32.mrb[0].mxu0
      %1459 = vmatprep.mubr.bf16.mxu0 0
      %1460 = vmatmul.mubr.bf16.gmra.mrb[0].mxu0 %v1313
      %v1461 = vpop.f32.mrb[0].mxu0
      %v1462 = vadd.f32 0.0, %v1461
      %v1463 = vpop.f32.mrb[0].mxu0
      %v1464 = vpop.f32.mrb[0].mxu0
      %v1465 = vadd.f32 0.0, %v1464
      %v1466 = vpop.f32.mrb[0].mxu0
      %1467 = vmatprep.mubr.bf16.mxu0 0
      %1468 = vmatmul.mubr.bf16.gmra.mrb[0].mxu0 %v1316
      %v1469 = vpop.f32.mrb[0].mxu0
      %v1470 = vadd.f32 0.0, %v1469
      %v1471 = vpop.f32.mrb[0].mxu0
      %v1472 = vpop.f32.mrb[0].mxu0
      %v1473 = vadd.f32 0.0, %v1472
      %v1474 = vpop.f32.mrb[0].mxu0
      %1475 = vmatprep.mubr.bf16.mxu0 0
      %1476 = vmatmul.mubr.bf16.gmra.mrb[0].mxu0 %v1319
      %v1477 = vpop.f32.mrb[0].mxu0
      %v1478 = vadd.f32 0.0, %v1477
      %v1479 = vpop.f32.mrb[0].mxu0
      %v1480 = vpop.f32.mrb[0].mxu0
      %v1481 = vadd.f32 0.0, %v1480
      %v1482 = vpop.f32.mrb[0].mxu0
      %1483 = vmatprep.mubr.bf16.mxu0 0
      %1484 = vmatmul.mubr.bf16.gmra.mrb[0].mxu0 %v1322
      %v1485 = vpop.f32.mrb[0].mxu0
      %v1486 = vadd.f32 0.0, %v1485
      %v1487 = vpop.f32.mrb[0].mxu0
      %v1488 = vpop.f32.mrb[0].mxu0
      %v1489 = vadd.f32 0.0, %v1488
      %v1490 = vpop.f32.mrb[0].mxu0
      %1491 = vmatprep.mubr.bf16.mxu0 0
      %1492 = vmatmul.mubr.bf16.gmra.mrb[0].mxu0 %v1325
      %v1493 = vpop.f32.mrb[0].mxu0
      %v1494 = vadd.f32 0.0, %v1493
      %v1495 = vpop.f32.mrb[0].mxu0
      %v1496 = vpop.f32.mrb[0].mxu0
      %v1497 = vadd.f32 0.0, %v1496
      %v1498 = vpop.f32.mrb[0].mxu0
      %1499 = vdwg.mxu0
      %vm1500 = vcmask 523264
      %v1501 = vsel %vm1500, %v1374, -inf
      %1502 = vmax.xlane.f32.xlu0 %v1501
      %v1503 = vpop.xlane.xlu0 %1502
      %v1504 = vsel %vm1500, %v1377, -inf
      %1505 = vmax.xlane.f32.xlu0 %v1504
      %v1506 = vpop.xlane.xlu0 %1505
      %v1507 = vsel %vm1500, %v1382, -inf
      %1508 = vmax.xlane.f32.xlu0 %v1507
      %v1509 = vpop.xlane.xlu0 %1508
      %v1510 = vsel %vm1500, %v1385, -inf
      %1511 = vmax.xlane.f32.xlu0 %v1510
      %v1512 = vpop.xlane.xlu0 %1511
      %v1513 = vsel %vm1500, %v1390, -inf
      %1514 = vmax.xlane.f32.xlu0 %v1513
      %v1515 = vpop.xlane.xlu0 %1514
      %v1516 = vsel %vm1500, %v1393, -inf
      %1517 = vmax.xlane.f32.xlu0 %v1516
      %v1518 = vpop.xlane.xlu0 %1517
      %v1519 = vsel %vm1500, %v1398, -inf
      %1520 = vmax.xlane.f32.xlu0 %v1519
      %v1521 = vpop.xlane.xlu0 %1520
      %v1522 = vsel %vm1500, %v1401, -inf
      %1523 = vmax.xlane.f32.xlu0 %v1522
      %v1524 = vpop.xlane.xlu0 %1523
      %v1525 = vsel %vm1500, %v1406, -inf
      %1526 = vmax.xlane.f32.xlu0 %v1525
      %v1527 = vpop.xlane.xlu0 %1526
      %v1528 = vsel %vm1500, %v1409, -inf
      %1529 = vmax.xlane.f32.xlu0 %v1528
      %v1530 = vpop.xlane.xlu0 %1529
      %v1531 = vsel %vm1500, %v1414, -inf
      %1532 = vmax.xlane.f32.xlu0 %v1531
      %v1533 = vpop.xlane.xlu0 %1532
      %v1534 = vsel %vm1500, %v1417, -inf
      %1535 = vmax.xlane.f32.xlu0 %v1534
      %v1536 = vpop.xlane.xlu0 %1535
      %v1537 = vsel %vm1500, %v1422, -inf
      %1538 = vmax.xlane.f32.xlu0 %v1537
      %v1539 = vpop.xlane.xlu0 %1538
      %v1540 = vsel %vm1500, %v1425, -inf
      %1541 = vmax.xlane.f32.xlu0 %v1540
      %v1542 = vpop.xlane.xlu0 %1541
      %v1543 = vsel %vm1500, %v1430, -inf
      %1544 = vmax.xlane.f32.xlu0 %v1543
      %v1545 = vpop.xlane.xlu0 %1544
      %v1546 = vsel %vm1500, %v1433, -inf
      %1547 = vmax.xlane.f32.xlu0 %v1546
      %v1548 = vpop.xlane.xlu0 %1547
      %v1549 = vsel %vm1500, %v1438, -inf
      %1550 = vmax.xlane.f32.xlu0 %v1549
      %v1551 = vpop.xlane.xlu0 %1550
      %v1552 = vsel %vm1500, %v1441, -inf
      %1553 = vmax.xlane.f32.xlu0 %v1552
      %v1554 = vpop.xlane.xlu0 %1553
      %v1555 = vsel %vm1500, %v1446, -inf
      %1556 = vmax.xlane.f32.xlu0 %v1555
      %v1557 = vpop.xlane.xlu0 %1556
      %v1558 = vsel %vm1500, %v1449, -inf
      %1559 = vmax.xlane.f32.xlu0 %v1558
      %v1560 = vpop.xlane.xlu0 %1559
      %v1561 = vsel %vm1500, %v1454, -inf
      %1562 = vmax.xlane.f32.xlu0 %v1561
      %v1563 = vpop.xlane.xlu0 %1562
      %v1564 = vsel %vm1500, %v1457, -inf
      %1565 = vmax.xlane.f32.xlu0 %v1564
      %v1566 = vpop.xlane.xlu0 %1565
      %v1567 = vsel %vm1500, %v1462, -inf
      %1568 = vmax.xlane.f32.xlu0 %v1567
      %v1569 = vpop.xlane.xlu0 %1568
      %v1570 = vsel %vm1500, %v1465, -inf
      %1571 = vmax.xlane.f32.xlu0 %v1570
      %v1572 = vpop.xlane.xlu0 %1571
      %v1573 = vsel %vm1500, %v1470, -inf
      %1574 = vmax.xlane.f32.xlu0 %v1573
      %v1575 = vpop.xlane.xlu0 %1574
      %v1576 = vsel %vm1500, %v1473, -inf
      %1577 = vmax.xlane.f32.xlu0 %v1576
      %v1578 = vpop.xlane.xlu0 %1577
      %v1579 = vsel %vm1500, %v1478, -inf
      %1580 = vmax.xlane.f32.xlu0 %v1579
      %v1581 = vpop.xlane.xlu0 %1580
      %v1582 = vsel %vm1500, %v1481, -inf
      %1583 = vmax.xlane.f32.xlu0 %v1582
      %v1584 = vpop.xlane.xlu0 %1583
      %v1585 = vsel %vm1500, %v1486, -inf
      %1586 = vmax.xlane.f32.xlu0 %v1585
      %v1587 = vpop.xlane.xlu0 %1586
      %v1588 = vsel %vm1500, %v1489, -inf
      %1589 = vmax.xlane.f32.xlu0 %v1588
      %v1590 = vpop.xlane.xlu0 %1589
      %v1591 = vsel %vm1500, %v1494, -inf
      %1592 = vmax.xlane.f32.xlu0 %v1591
      %v1593 = vpop.xlane.xlu0 %1592
      %v1594 = vsel %vm1500, %v1497, -inf
      %1595 = vmax.xlane.f32.xlu0 %v1594
      %v1596 = vpop.xlane.xlu0 %1595
      %v1597 = vsub.f32 %v1374, %v1503
      %v1598 = vsub.f32 %v1377, %v1506
      %v1599 = vsub.f32 %v1382, %v1509
      %v1600 = vsub.f32 %v1385, %v1512
      %v1601 = vsub.f32 %v1390, %v1515
      %v1602 = vsub.f32 %v1393, %v1518
      %v1603 = vsub.f32 %v1398, %v1521
      %v1604 = vsub.f32 %v1401, %v1524
      %v1605 = vsub.f32 %v1406, %v1527
      %v1606 = vsub.f32 %v1409, %v1530
      %v1607 = vsub.f32 %v1414, %v1533
      %v1608 = vsub.f32 %v1417, %v1536
      %v1609 = vsub.f32 %v1422, %v1539
      %v1610 = vsub.f32 %v1425, %v1542
      %v1611 = vsub.f32 %v1430, %v1545
      %v1612 = vsub.f32 %v1433, %v1548
      %v1613 = vsub.f32 %v1438, %v1551
      %v1614 = vsub.f32 %v1441, %v1554
      %v1615 = vsub.f32 %v1446, %v1557
      %v1616 = vsub.f32 %v1449, %v1560
      %v1617 = vsub.f32 %v1454, %v1563
      %v1618 = vsub.f32 %v1457, %v1566
      %v1619 = vsub.f32 %v1462, %v1569
      %v1620 = vsub.f32 %v1465, %v1572
      %v1621 = vsub.f32 %v1470, %v1575
      %v1622 = vsub.f32 %v1473, %v1578
      %v1623 = vsub.f32 %v1478, %v1581
      %v1624 = vsub.f32 %v1481, %v1584
      %v1625 = vsub.f32 %v1486, %v1587
      %v1626 = vsub.f32 %v1489, %v1590
      %v1627 = vsub.f32 %v1494, %v1593
      %v1628 = vsub.f32 %v1497, %v1596
      %v1629 = vpack.c.bf16 %v1598, %v1597
      %v1630 = vpack.c.bf16 %v1600, %v1599
      %v1631 = vpack.c.bf16 %v1602, %v1601
      %v1632 = vpack.c.bf16 %v1604, %v1603
      %v1633 = vpack.c.bf16 %v1606, %v1605
      %v1634 = vpack.c.bf16 %v1608, %v1607
      %v1635 = vpack.c.bf16 %v1610, %v1609
      %v1636 = vpack.c.bf16 %v1612, %v1611
      %v1637 = vpack.c.bf16 %v1614, %v1613
      %v1638 = vpack.c.bf16 %v1616, %v1615
      %v1639 = vpack.c.bf16 %v1618, %v1617
      %v1640 = vpack.c.bf16 %v1620, %v1619
      %v1641 = vpack.c.bf16 %v1622, %v1621
      %v1642 = vpack.c.bf16 %v1624, %v1623
      %v1643 = vpack.c.bf16 %v1626, %v1625
      %v1644 = vpack.c.bf16 %v1628, %v1627
      %v1646 = vmul.bf16 %v1629, 1069105081
      %v1647 = vpow.bf16.pop %v1646
      %v1649 = vmul.bf16 %v1630, 1069105081
      %v1650 = vpow.bf16.pop %v1649
      %v1652 = vmul.bf16 %v1631, 1069105081
      %v1653 = vpow.bf16.pop %v1652
      %v1655 = vmul.bf16 %v1632, 1069105081
      %v1656 = vpow.bf16.pop %v1655
      %v1658 = vmul.bf16 %v1633, 1069105081
      %v1659 = vpow.bf16.pop %v1658
      %v1661 = vmul.bf16 %v1634, 1069105081
      %v1662 = vpow.bf16.pop %v1661
      %v1664 = vmul.bf16 %v1635, 1069105081
      %v1665 = vpow.bf16.pop %v1664
      %v1667 = vmul.bf16 %v1636, 1069105081
      %v1668 = vpow.bf16.pop %v1667
      %v1670 = vmul.bf16 %v1637, 1069105081
      %v1671 = vpow.bf16.pop %v1670
      %v1673 = vmul.bf16 %v1638, 1069105081
      %v1674 = vpow.bf16.pop %v1673
      %v1676 = vmul.bf16 %v1639, 1069105081
      %v1677 = vpow.bf16.pop %v1676
      %v1679 = vmul.bf16 %v1640, 1069105081
      %v1680 = vpow.bf16.pop %v1679
      %v1682 = vmul.bf16 %v1641, 1069105081
      %v1683 = vpow.bf16.pop %v1682
      %v1685 = vmul.bf16 %v1642, 1069105081
      %v1686 = vpow.bf16.pop %v1685
      %v1688 = vmul.bf16 %v1643, 1069105081
      %v1689 = vpow.bf16.pop %v1688
      %v1691 = vmul.bf16 %v1644, 1069105081
      %v1692 = vpow.bf16.pop %v1691
      %v1693 = vunpack.c.l.bf16 %v1647
      %v1694 = vunpack.c.h.bf16 %v1647
      %v1695 = vunpack.c.l.bf16 %v1650
      %v1696 = vunpack.c.h.bf16 %v1650
      %v1697 = vunpack.c.l.bf16 %v1653
      %v1698 = vunpack.c.h.bf16 %v1653
      %v1699 = vunpack.c.l.bf16 %v1656
      %v1700 = vunpack.c.h.bf16 %v1656
      %v1701 = vunpack.c.l.bf16 %v1659
      %v1702 = vunpack.c.h.bf16 %v1659
      %v1703 = vunpack.c.l.bf16 %v1662
      %v1704 = vunpack.c.h.bf16 %v1662
      %v1705 = vunpack.c.l.bf16 %v1665
      %v1706 = vunpack.c.h.bf16 %v1665
      %v1707 = vunpack.c.l.bf16 %v1668
      %v1708 = vunpack.c.h.bf16 %v1668
      %v1709 = vunpack.c.l.bf16 %v1671
      %v1710 = vunpack.c.h.bf16 %v1671
      %v1711 = vunpack.c.l.bf16 %v1674
      %v1712 = vunpack.c.h.bf16 %v1674
      %v1713 = vunpack.c.l.bf16 %v1677
      %v1714 = vunpack.c.h.bf16 %v1677
      %v1715 = vunpack.c.l.bf16 %v1680
      %v1716 = vunpack.c.h.bf16 %v1680
      %v1717 = vunpack.c.l.bf16 %v1683
      %v1718 = vunpack.c.h.bf16 %v1683
      %v1719 = vunpack.c.l.bf16 %v1686
      %v1720 = vunpack.c.h.bf16 %v1686
      %v1721 = vunpack.c.l.bf16 %v1689
      %v1722 = vunpack.c.h.bf16 %v1689
      %v1723 = vunpack.c.l.bf16 %v1692
      %v1724 = vunpack.c.h.bf16 %v1692
      %v1725 = vsel %vm1500, %v1693, 0.0
      %1726 = vadd.xlane.f32.xlu0 %v1725
      %v1727 = vpop.xlane.xlu0 %1726
      %v1728 = vsel %vm1500, %v1694, 0.0
      %1729 = vadd.xlane.f32.xlu0 %v1728
      %v1730 = vpop.xlane.xlu0 %1729
      %v1731 = vsel %vm1500, %v1695, 0.0
      %1732 = vadd.xlane.f32.xlu0 %v1731
      %v1733 = vpop.xlane.xlu0 %1732
      %v1734 = vsel %vm1500, %v1696, 0.0
      %1735 = vadd.xlane.f32.xlu0 %v1734
      %v1736 = vpop.xlane.xlu0 %1735
      %v1737 = vsel %vm1500, %v1697, 0.0
      %1738 = vadd.xlane.f32.xlu0 %v1737
      %v1739 = vpop.xlane.xlu0 %1738
      %v1740 = vsel %vm1500, %v1698, 0.0
      %1741 = vadd.xlane.f32.xlu0 %v1740
      %v1742 = vpop.xlane.xlu0 %1741
      %v1743 = vsel %vm1500, %v1699, 0.0
      %1744 = vadd.xlane.f32.xlu0 %v1743
      %v1745 = vpop.xlane.xlu0 %1744
      %v1746 = vsel %vm1500, %v1700, 0.0
      %1747 = vadd.xlane.f32.xlu0 %v1746
      %v1748 = vpop.xlane.xlu0 %1747
      %v1749 = vsel %vm1500, %v1701, 0.0
      %1750 = vadd.xlane.f32.xlu0 %v1749
      %v1751 = vpop.xlane.xlu0 %1750
      %v1752 = vsel %vm1500, %v1702, 0.0
      %1753 = vadd.xlane.f32.xlu0 %v1752
      %v1754 = vpop.xlane.xlu0 %1753
      %v1755 = vsel %vm1500, %v1703, 0.0
      %1756 = vadd.xlane.f32.xlu0 %v1755
      %v1757 = vpop.xlane.xlu0 %1756
      %v1758 = vsel %vm1500, %v1704, 0.0
      %1759 = vadd.xlane.f32.xlu0 %v1758
      %v1760 = vpop.xlane.xlu0 %1759
      %v1761 = vsel %vm1500, %v1705, 0.0
      %1762 = vadd.xlane.f32.xlu0 %v1761
      %v1763 = vpop.xlane.xlu0 %1762
      %v1764 = vsel %vm1500, %v1706, 0.0
      %1765 = vadd.xlane.f32.xlu0 %v1764
      %v1766 = vpop.xlane.xlu0 %1765
      %v1767 = vsel %vm1500, %v1707, 0.0
      %1768 = vadd.xlane.f32.xlu0 %v1767
      %v1769 = vpop.xlane.xlu0 %1768
      %v1770 = vsel %vm1500, %v1708, 0.0
      %1771 = vadd.xlane.f32.xlu0 %v1770
      %v1772 = vpop.xlane.xlu0 %1771
      %v1773 = vsel %vm1500, %v1709, 0.0
      %1774 = vadd.xlane.f32.xlu0 %v1773
      %v1775 = vpop.xlane.xlu0 %1774
      %v1776 = vsel %vm1500, %v1710, 0.0
      %1777 = vadd.xlane.f32.xlu0 %v1776
      %v1778 = vpop.xlane.xlu0 %1777
      %v1779 = vsel %vm1500, %v1711, 0.0
      %1780 = vadd.xlane.f32.xlu0 %v1779
      %v1781 = vpop.xlane.xlu0 %1780
      %v1782 = vsel %vm1500, %v1712, 0.0
      %1783 = vadd.xlane.f32.xlu0 %v1782
      %v1784 = vpop.xlane.xlu0 %1783
      %v1785 = vsel %vm1500, %v1713, 0.0
      %1786 = vadd.xlane.f32.xlu0 %v1785
      %v1787 = vpop.xlane.xlu0 %1786
      %v1788 = vsel %vm1500, %v1714, 0.0
      %1789 = vadd.xlane.f32.xlu0 %v1788
      %v1790 = vpop.xlane.xlu0 %1789
      %v1791 = vsel %vm1500, %v1715, 0.0
      %1792 = vadd.xlane.f32.xlu0 %v1791
      %v1793 = vpop.xlane.xlu0 %1792
      %v1794 = vsel %vm1500, %v1716, 0.0
      %1795 = vadd.xlane.f32.xlu0 %v1794
      %v1796 = vpop.xlane.xlu0 %1795
      %v1797 = vsel %vm1500, %v1717, 0.0
      %1798 = vadd.xlane.f32.xlu0 %v1797
      %v1799 = vpop.xlane.xlu0 %1798
      %v1800 = vsel %vm1500, %v1718, 0.0
      %1801 = vadd.xlane.f32.xlu0 %v1800
      %v1802 = vpop.xlane.xlu0 %1801
      %v1803 = vsel %vm1500, %v1719, 0.0
      %1804 = vadd.xlane.f32.xlu0 %v1803
      %v1805 = vpop.xlane.xlu0 %1804
      %v1806 = vsel %vm1500, %v1720, 0.0
      %1807 = vadd.xlane.f32.xlu0 %v1806
      %v1808 = vpop.xlane.xlu0 %1807
      %v1809 = vsel %vm1500, %v1721, 0.0
      %1810 = vadd.xlane.f32.xlu0 %v1809
      %v1811 = vpop.xlane.xlu0 %1810
      %v1812 = vsel %vm1500, %v1722, 0.0
      %1813 = vadd.xlane.f32.xlu0 %v1812
      %v1814 = vpop.xlane.xlu0 %1813
      %v1815 = vsel %vm1500, %v1723, 0.0
      %1816 = vadd.xlane.f32.xlu0 %v1815
      %v1817 = vpop.xlane.xlu0 %1816
      %v1818 = vsel %vm1500, %v1724, 0.0
      %1819 = vadd.xlane.f32.xlu0 %v1818
      %v1820 = vpop.xlane.xlu0 %1819
      %v1822 = vsel %vm1500, %v1647, 0
      %v1825 = vsel %vm1500, %v1650, 0
      %v1828 = vsel %vm1500, %v1653, 0
      %v1831 = vsel %vm1500, %v1656, 0
      %v1834 = vsel %vm1500, %v1659, 0
      %v1837 = vsel %vm1500, %v1662, 0
      %v1840 = vsel %vm1500, %v1665, 0
      %v1843 = vsel %vm1500, %v1668, 0
      %v1846 = vsel %vm1500, %v1671, 0
      %v1849 = vsel %vm1500, %v1674, 0
      %v1852 = vsel %vm1500, %v1677, 0
      %v1855 = vsel %vm1500, %v1680, 0
      %v1858 = vsel %vm1500, %v1683, 0
      %v1861 = vsel %vm1500, %v1686, 0
      %v1864 = vsel %vm1500, %v1689, 0
      %v1867 = vsel %vm1500, %v1692, 0
      %1869 = vmatprep.subr.bf16.mxu0 0
      %1870 = vmatpush1.bf16.msra.mxu0 %v1274
      %1871 = vmatprep.subr.bf16.mxu0 0
      %1872 = vmatpush1.bf16.msra.mxu0 %v1275
      %1873 = vmatprep.subr.bf16.mxu0 0
      %1874 = vmatpush1.bf16.msra.mxu0 %v1276
      %1875 = vmatprep.subr.bf16.mxu0 0
      %1876 = vmatpush1.bf16.msra.mxu0 %v1277
      %1877 = vmatprep.subr.bf16.mxu0 0
      %1878 = vmatpush1.bf16.msra.mxu0 0
      %1879 = vmatprep.subr.bf16.mxu0 0
      %1880 = vmatpush1.bf16.msra.mxu0 0
      %1881 = vmatprep.subr.bf16.mxu0 0
      %1882 = vmatpush1.bf16.msra.mxu0 0
      %1883 = vmatprep.subr.bf16.mxu0 0
      %1884 = vmatpush1.bf16.msra.mxu0 0
      %1885 = vmatprep.subr.bf16.mxu0 0
      %1886 = vmatpush1.bf16.msra.mxu0 0
      %1887 = vmatprep.subr.bf16.mxu0 0
      %1888 = vmatpush1.bf16.msra.mxu0 0
      %1889 = vmatprep.subr.bf16.mxu0 0
      %1890 = vmatpush1.bf16.msra.mxu0 0
      %1891 = vmatprep.subr.bf16.mxu0 0
      %1892 = vmatpush1.bf16.msra.mxu0 0
      %1893 = vmatprep.subr.bf16.mxu0 0
      %1894 = vmatpush1.bf16.msra.mxu0 0
      %1895 = vmatprep.subr.bf16.mxu0 0
      %1896 = vmatpush1.bf16.msra.mxu0 0
      %1897 = vmatprep.subr.bf16.mxu0 0
      %1898 = vmatpush1.bf16.msra.mxu0 0
      %1899 = vmatprep.subr.bf16.mxu0 0
      %1900 = vmatpush1.bf16.msra.mxu0 0
      %1901 = vmatprep.mubr.bf16.mxu0 0
      %1902 = vmatmul.mubr.bf16.gmra.mrb[0].mxu0 %v1822
      %v1903 = vpop.f32.mrb[0].mxu0
      %v1904 = vadd.f32 0.0, %v1903
      %v1905 = vpop.f32.mrb[0].mxu0
      %v1906 = vpop.f32.mrb[0].mxu0
      %v1907 = vadd.f32 0.0, %v1906
      %v1908 = vpop.f32.mrb[0].mxu0
      %1909 = vmatprep.mubr.bf16.mxu0 0
      %1910 = vmatmul.mubr.bf16.gmra.mrb[0].mxu0 %v1825
      %v1911 = vpop.f32.mrb[0].mxu0
      %v1912 = vadd.f32 0.0, %v1911
      %v1913 = vpop.f32.mrb[0].mxu0
      %v1914 = vpop.f32.mrb[0].mxu0
      %v1915 = vadd.f32 0.0, %v1914
      %v1916 = vpop.f32.mrb[0].mxu0
      %1917 = vmatprep.mubr.bf16.mxu0 0
      %1918 = vmatmul.mubr.bf16.gmra.mrb[0].mxu0 %v1828
      %v1919 = vpop.f32.mrb[0].mxu0
      %v1920 = vadd.f32 0.0, %v1919
      %v1921 = vpop.f32.mrb[0].mxu0
      %v1922 = vpop.f32.mrb[0].mxu0
      %v1923 = vadd.f32 0.0, %v1922
      %v1924 = vpop.f32.mrb[0].mxu0
      %1925 = vmatprep.mubr.bf16.mxu0 0
      %1926 = vmatmul.mubr.bf16.gmra.mrb[0].mxu0 %v1831
      %v1927 = vpop.f32.mrb[0].mxu0
      %v1928 = vadd.f32 0.0, %v1927
      %v1929 = vpop.f32.mrb[0].mxu0
      %v1930 = vpop.f32.mrb[0].mxu0
      %v1931 = vadd.f32 0.0, %v1930
      %v1932 = vpop.f32.mrb[0].mxu0
      %1933 = vmatprep.mubr.bf16.mxu0 0
      %1934 = vmatmul.mubr.bf16.gmra.mrb[0].mxu0 %v1834
      %v1935 = vpop.f32.mrb[0].mxu0
      %v1936 = vadd.f32 0.0, %v1935
      %v1937 = vpop.f32.mrb[0].mxu0
      %v1938 = vpop.f32.mrb[0].mxu0
      %v1939 = vadd.f32 0.0, %v1938
      %v1940 = vpop.f32.mrb[0].mxu0
      %1941 = vmatprep.mubr.bf16.mxu0 0
      %1942 = vmatmul.mubr.bf16.gmra.mrb[0].mxu0 %v1837
      %v1943 = vpop.f32.mrb[0].mxu0
      %v1944 = vadd.f32 0.0, %v1943
      %v1945 = vpop.f32.mrb[0].mxu0
      %v1946 = vpop.f32.mrb[0].mxu0
      %v1947 = vadd.f32 0.0, %v1946
      %v1948 = vpop.f32.mrb[0].mxu0
      %1949 = vmatprep.mubr.bf16.mxu0 0
      %1950 = vmatmul.mubr.bf16.gmra.mrb[0].mxu0 %v1840
      %v1951 = vpop.f32.mrb[0].mxu0
      %v1952 = vadd.f32 0.0, %v1951
      %v1953 = vpop.f32.mrb[0].mxu0
      %v1954 = vpop.f32.mrb[0].mxu0
      %v1955 = vadd.f32 0.0, %v1954
      %v1956 = vpop.f32.mrb[0].mxu0
      %1957 = vmatprep.mubr.bf16.mxu0 0
      %1958 = vmatmul.mubr.bf16.gmra.mrb[0].mxu0 %v1843
      %v1959 = vpop.f32.mrb[0].mxu0
      %v1960 = vadd.f32 0.0, %v1959
      %v1961 = vpop.f32.mrb[0].mxu0
      %v1962 = vpop.f32.mrb[0].mxu0
      %v1963 = vadd.f32 0.0, %v1962
      %v1964 = vpop.f32.mrb[0].mxu0
      %1965 = vmatprep.mubr.bf16.mxu0 0
      %1966 = vmatmul.mubr.bf16.gmra.mrb[0].mxu0 %v1846
      %v1967 = vpop.f32.mrb[0].mxu0
      %v1968 = vadd.f32 0.0, %v1967
      %v1969 = vpop.f32.mrb[0].mxu0
      %v1970 = vpop.f32.mrb[0].mxu0
      %v1971 = vadd.f32 0.0, %v1970
      %v1972 = vpop.f32.mrb[0].mxu0
      %1973 = vmatprep.mubr.bf16.mxu0 0
      %1974 = vmatmul.mubr.bf16.gmra.mrb[0].mxu0 %v1849
      %v1975 = vpop.f32.mrb[0].mxu0
      %v1976 = vadd.f32 0.0, %v1975
      %v1977 = vpop.f32.mrb[0].mxu0
      %v1978 = vpop.f32.mrb[0].mxu0
      %v1979 = vadd.f32 0.0, %v1978
      %v1980 = vpop.f32.mrb[0].mxu0
      %1981 = vmatprep.mubr.bf16.mxu0 0
      %1982 = vmatmul.mubr.bf16.gmra.mrb[0].mxu0 %v1852
      %v1983 = vpop.f32.mrb[0].mxu0
      %v1984 = vadd.f32 0.0, %v1983
      %v1985 = vpop.f32.mrb[0].mxu0
      %v1986 = vpop.f32.mrb[0].mxu0
      %v1987 = vadd.f32 0.0, %v1986
      %v1988 = vpop.f32.mrb[0].mxu0
      %1989 = vmatprep.mubr.bf16.mxu0 0
      %1990 = vmatmul.mubr.bf16.gmra.mrb[0].mxu0 %v1855
      %v1991 = vpop.f32.mrb[0].mxu0
      %v1992 = vadd.f32 0.0, %v1991
      %v1993 = vpop.f32.mrb[0].mxu0
      %v1994 = vpop.f32.mrb[0].mxu0
      %v1995 = vadd.f32 0.0, %v1994
      %v1996 = vpop.f32.mrb[0].mxu0
      %1997 = vmatprep.mubr.bf16.mxu0 0
      %1998 = vmatmul.mubr.bf16.gmra.mrb[0].mxu0 %v1858
      %v1999 = vpop.f32.mrb[0].mxu0
      %v2000 = vadd.f32 0.0, %v1999
      %v2001 = vpop.f32.mrb[0].mxu0
      %v2002 = vpop.f32.mrb[0].mxu0
      %v2003 = vadd.f32 0.0, %v2002
      %v2004 = vpop.f32.mrb[0].mxu0
      %2005 = vmatprep.mubr.bf16.mxu0 0
      %2006 = vmatmul.mubr.bf16.gmra.mrb[0].mxu0 %v1861
      %v2007 = vpop.f32.mrb[0].mxu0
      %v2008 = vadd.f32 0.0, %v2007
      %v2009 = vpop.f32.mrb[0].mxu0
      %v2010 = vpop.f32.mrb[0].mxu0
      %v2011 = vadd.f32 0.0, %v2010
      %v2012 = vpop.f32.mrb[0].mxu0
      %2013 = vmatprep.mubr.bf16.mxu0 0
      %2014 = vmatmul.mubr.bf16.gmra.mrb[0].mxu0 %v1864
      %v2015 = vpop.f32.mrb[0].mxu0
      %v2016 = vadd.f32 0.0, %v2015
      %v2017 = vpop.f32.mrb[0].mxu0
      %v2018 = vpop.f32.mrb[0].mxu0
      %v2019 = vadd.f32 0.0, %v2018
      %v2020 = vpop.f32.mrb[0].mxu0
      %2021 = vmatprep.mubr.bf16.mxu0 0
      %2022 = vmatmul.mubr.bf16.gmra.mrb[0].mxu0 %v1867
      %v2023 = vpop.f32.mrb[0].mxu0
      %v2024 = vadd.f32 0.0, %v2023
      %v2025 = vpop.f32.mrb[0].mxu0
      %v2026 = vpop.f32.mrb[0].mxu0
      %v2027 = vadd.f32 0.0, %v2026
      %v2028 = vpop.f32.mrb[0].mxu0
      %2029 = vdwg.mxu0
      %v2030 = vrcp.pop %v1727
      %v2031 = vrcp.pop %v1730
      %v2032 = vrcp.pop %v1733
      %v2033 = vrcp.pop %v1736
      %v2034 = vrcp.pop %v1739
      %v2035 = vrcp.pop %v1742
      %v2036 = vrcp.pop %v1745
      %v2037 = vrcp.pop %v1748
      %v2038 = vrcp.pop %v1751
      %v2039 = vrcp.pop %v1754
      %v2040 = vrcp.pop %v1757
      %v2041 = vrcp.pop %v1760
      %v2042 = vrcp.pop %v1763
      %v2043 = vrcp.pop %v1766
      %v2044 = vrcp.pop %v1769
      %v2045 = vrcp.pop %v1772
      %v2046 = vrcp.pop %v1775
      %v2047 = vrcp.pop %v1778
      %v2048 = vrcp.pop %v1781
      %v2049 = vrcp.pop %v1784
      %v2050 = vrcp.pop %v1787
      %v2051 = vrcp.pop %v1790
      %v2052 = vrcp.pop %v1793
      %v2053 = vrcp.pop %v1796
      %v2054 = vrcp.pop %v1799
      %v2055 = vrcp.pop %v1802
      %v2056 = vrcp.pop %v1805
      %v2057 = vrcp.pop %v1808
      %v2058 = vrcp.pop %v1811
      %v2059 = vrcp.pop %v1814
      %v2060 = vrcp.pop %v1817
      %v2061 = vrcp.pop %v1820
      %v2062 = vmul.f32 %v1904, %v2030
      %v2063 = vmul.f32 %v1907, %v2031
      %v2064 = vmul.f32 %v1912, %v2032
      %v2065 = vmul.f32 %v1915, %v2033
      %v2066 = vmul.f32 %v1920, %v2034
      %v2067 = vmul.f32 %v1923, %v2035
      %v2068 = vmul.f32 %v1928, %v2036
      %v2069 = vmul.f32 %v1931, %v2037
      %v2070 = vmul.f32 %v1936, %v2038
      %v2071 = vmul.f32 %v1939, %v2039
      %v2072 = vmul.f32 %v1944, %v2040
      %v2073 = vmul.f32 %v1947, %v2041
      %v2074 = vmul.f32 %v1952, %v2042
      %v2075 = vmul.f32 %v1955, %v2043
      %v2076 = vmul.f32 %v1960, %v2044
      %v2077 = vmul.f32 %v1963, %v2045
      %v2078 = vmul.f32 %v1968, %v2046
      %v2079 = vmul.f32 %v1971, %v2047
      %v2080 = vmul.f32 %v1976, %v2048
      %v2081 = vmul.f32 %v1979, %v2049
      %v2082 = vmul.f32 %v1984, %v2050
      %v2083 = vmul.f32 %v1987, %v2051
      %v2084 = vmul.f32 %v1992, %v2052
      %v2085 = vmul.f32 %v1995, %v2053
      %v2086 = vmul.f32 %v2000, %v2054
      %v2087 = vmul.f32 %v2003, %v2055
      %v2088 = vmul.f32 %v2008, %v2056
      %v2089 = vmul.f32 %v2011, %v2057
      %v2090 = vmul.f32 %v2016, %v2058
      %v2091 = vmul.f32 %v2019, %v2059
      %v2092 = vmul.f32 %v2024, %v2060
      %v2093 = vmul.f32 %v2027, %v2061
      %v2094 = vpack.c.bf16 %v2063, %v2062
      %v2095 = vpack.c.bf16 %v2065, %v2064
      %v2096 = vpack.c.bf16 %v2067, %v2066
      %v2097 = vpack.c.bf16 %v2069, %v2068
      %v2098 = vpack.c.bf16 %v2071, %v2070
      %v2099 = vpack.c.bf16 %v2073, %v2072
      %v2100 = vpack.c.bf16 %v2075, %v2074
      %v2101 = vpack.c.bf16 %v2077, %v2076
      %v2102 = vpack.c.bf16 %v2079, %v2078
      %v2103 = vpack.c.bf16 %v2081, %v2080
      %v2104 = vpack.c.bf16 %v2083, %v2082
      %v2105 = vpack.c.bf16 %v2085, %v2084
      %v2106 = vpack.c.bf16 %v2087, %v2086
      %v2107 = vpack.c.bf16 %v2089, %v2088
      %v2108 = vpack.c.bf16 %v2091, %v2090
      %v2109 = vpack.c.bf16 %v2093, %v2092
      %v2110 = vld [vmem:[%s4] sm:$0xf]
      %vm2111 = vcmask 64512
      %v2113 = vsel %vm2111, %v2094, 0
      %v2116 = vsel %vm2111, %v2095, 0
      %v2119 = vsel %vm2111, %v2096, 0
      %v2122 = vsel %vm2111, %v2097, 0
      %v2125 = vsel %vm2111, %v2098, 0
      %v2128 = vsel %vm2111, %v2099, 0
      %v2131 = vsel %vm2111, %v2100, 0
      %v2134 = vsel %vm2111, %v2101, 0
      %v2137 = vsel %vm2111, %v2102, 0
      %v2140 = vsel %vm2111, %v2103, 0
      %v2143 = vsel %vm2111, %v2104, 0
      %v2146 = vsel %vm2111, %v2105, 0
      %v2149 = vsel %vm2111, %v2106, 0
      %v2152 = vsel %vm2111, %v2107, 0
      %v2155 = vsel %vm2111, %v2108, 0
      %v2158 = vsel %vm2111, %v2109, 0
      %vm2160 = vcmask 1043456
      %v2162 = vsel %vm2160, %v2110, 0
      %2164 = vmatprep.subr.bf16.mxu0 0
      %2165 = vmatpush1.bf16.msra.mxu0 %v2162
      %2166 = vmatprep.subr.bf16.mxu0 0
      %2167 = vmatpush1.bf16.msra.mxu0 0
      %2168 = vmatprep.subr.bf16.mxu0 0
      %2169 = vmatpush1.bf16.msra.mxu0 0
      %2170 = vmatprep.subr.bf16.mxu0 0
      %2171 = vmatpush1.bf16.msra.mxu0 0
      %2172 = vmatprep.subr.bf16.mxu0 0
      %2173 = vmatpush1.bf16.msra.mxu0 0
      %2174 = vmatprep.subr.bf16.mxu0 0
      %2175 = vmatpush1.bf16.msra.mxu0 0
      %2176 = vmatprep.subr.bf16.mxu0 0
      %2177 = vmatpush1.bf16.msra.mxu0 0
      %2178 = vmatprep.subr.bf16.mxu0 0
      %2179 = vmatpush1.bf16.msra.mxu0 0
      %2180 = vmatprep.subr.bf16.mxu0 0
      %2181 = vmatpush1.bf16.msra.mxu0 0
      %2182 = vmatprep.subr.bf16.mxu0 0
      %2183 = vmatpush1.bf16.msra.mxu0 0
      %2184 = vmatprep.subr.bf16.mxu0 0
      %2185 = vmatpush1.bf16.msra.mxu0 0
      %2186 = vmatprep.subr.bf16.mxu0 0
      %2187 = vmatpush1.bf16.msra.mxu0 0
      %2188 = vmatprep.subr.bf16.mxu0 0
      %2189 = vmatpush1.bf16.msra.mxu0 0
      %2190 = vmatprep.subr.bf16.mxu0 0
      %2191 = vmatpush1.bf16.msra.mxu0 0
      %2192 = vmatprep.subr.bf16.mxu0 0
      %2193 = vmatpush1.bf16.msra.mxu0 0
      %2194 = vmatprep.subr.bf16.mxu0 0
      %2195 = vmatpush1.bf16.msra.mxu0 0
      %2196 = vmatprep.mubr.bf16.mxu0 0
      %2197 = vmatmul.mubr.bf16.gmra.mrb[0].mxu0 %v2113
      %v2198 = vpop.f32.mrb[0].mxu0
      %v2199 = vadd.f32 0.0, %v2198
      %v2200 = vpop.f32.mrb[0].mxu0
      %v2201 = vpop.f32.mrb[0].mxu0
      %v2202 = vadd.f32 0.0, %v2201
      %v2203 = vpop.f32.mrb[0].mxu0
      %2204 = vmatprep.mubr.bf16.mxu0 0
      %2205 = vmatmul.mubr.bf16.gmra.mrb[0].mxu0 %v2116
      %v2206 = vpop.f32.mrb[0].mxu0
      %v2207 = vadd.f32 0.0, %v2206
      %v2208 = vpop.f32.mrb[0].mxu0
      %v2209 = vpop.f32.mrb[0].mxu0
      %v2210 = vadd.f32 0.0, %v2209
      %v2211 = vpop.f32.mrb[0].mxu0
      %2212 = vmatprep.mubr.bf16.mxu0 0
      %2213 = vmatmul.mubr.bf16.gmra.mrb[0].mxu0 %v2119
      %v2214 = vpop.f32.mrb[0].mxu0
      %v2215 = vadd.f32 0.0, %v2214
      %v2216 = vpop.f32.mrb[0].mxu0
      %v2217 = vpop.f32.mrb[0].mxu0
      %v2218 = vadd.f32 0.0, %v2217
      %v2219 = vpop.f32.mrb[0].mxu0
      %2220 = vmatprep.mubr.bf16.mxu0 0
      %2221 = vmatmul.mubr.bf16.gmra.mrb[0].mxu0 %v2122
      %v2222 = vpop.f32.mrb[0].mxu0
      %v2223 = vadd.f32 0.0, %v2222
      %v2224 = vpop.f32.mrb[0].mxu0
      %v2225 = vpop.f32.mrb[0].mxu0
      %v2226 = vadd.f32 0.0, %v2225
      %v2227 = vpop.f32.mrb[0].mxu0
      %2228 = vmatprep.mubr.bf16.mxu0 0
      %2229 = vmatmul.mubr.bf16.gmra.mrb[0].mxu0 %v2125
      %v2230 = vpop.f32.mrb[0].mxu0
      %v2231 = vadd.f32 0.0, %v2230
      %v2232 = vpop.f32.mrb[0].mxu0
      %v2233 = vpop.f32.mrb[0].mxu0
      %v2234 = vadd.f32 0.0, %v2233
      %v2235 = vpop.f32.mrb[0].mxu0
      %2236 = vmatprep.mubr.bf16.mxu0 0
      %2237 = vmatmul.mubr.bf16.gmra.mrb[0].mxu0 %v2128
      %v2238 = vpop.f32.mrb[0].mxu0
      %v2239 = vadd.f32 0.0, %v2238
      %v2240 = vpop.f32.mrb[0].mxu0
      %v2241 = vpop.f32.mrb[0].mxu0
      %v2242 = vadd.f32 0.0, %v2241
      %v2243 = vpop.f32.mrb[0].mxu0
      %2244 = vmatprep.mubr.bf16.mxu0 0
      %2245 = vmatmul.mubr.bf16.gmra.mrb[0].mxu0 %v2131
      %v2246 = vpop.f32.mrb[0].mxu0
      %v2247 = vadd.f32 0.0, %v2246
      %v2248 = vpop.f32.mrb[0].mxu0
      %v2249 = vpop.f32.mrb[0].mxu0
      %v2250 = vadd.f32 0.0, %v2249
      %v2251 = vpop.f32.mrb[0].mxu0
      %2252 = vmatprep.mubr.bf16.mxu0 0
      %2253 = vmatmul.mubr.bf16.gmra.mrb[0].mxu0 %v2134
      %v2254 = vpop.f32.mrb[0].mxu0
      %v2255 = vadd.f32 0.0, %v2254
      %v2256 = vpop.f32.mrb[0].mxu0
      %v2257 = vpop.f32.mrb[0].mxu0
      %v2258 = vadd.f32 0.0, %v2257
      %v2259 = vpop.f32.mrb[0].mxu0
      %2260 = vmatprep.mubr.bf16.mxu0 0
      %2261 = vmatmul.mubr.bf16.gmra.mrb[0].mxu0 %v2137
      %v2262 = vpop.f32.mrb[0].mxu0
      %v2263 = vadd.f32 0.0, %v2262
      %v2264 = vpop.f32.mrb[0].mxu0
      %v2265 = vpop.f32.mrb[0].mxu0
      %v2266 = vadd.f32 0.0, %v2265
      %v2267 = vpop.f32.mrb[0].mxu0
      %2268 = vmatprep.mubr.bf16.mxu0 0
      %2269 = vmatmul.mubr.bf16.gmra.mrb[0].mxu0 %v2140
      %v2270 = vpop.f32.mrb[0].mxu0
      %v2271 = vadd.f32 0.0, %v2270
      %v2272 = vpop.f32.mrb[0].mxu0
      %v2273 = vpop.f32.mrb[0].mxu0
      %v2274 = vadd.f32 0.0, %v2273
      %v2275 = vpop.f32.mrb[0].mxu0
      %2276 = vmatprep.mubr.bf16.mxu0 0
      %2277 = vmatmul.mubr.bf16.gmra.mrb[0].mxu0 %v2143
      %v2278 = vpop.f32.mrb[0].mxu0
      %v2279 = vadd.f32 0.0, %v2278
      %v2280 = vpop.f32.mrb[0].mxu0
      %v2281 = vpop.f32.mrb[0].mxu0
      %v2282 = vadd.f32 0.0, %v2281
      %v2283 = vpop.f32.mrb[0].mxu0
      %2284 = vmatprep.mubr.bf16.mxu0 0
      %2285 = vmatmul.mubr.bf16.gmra.mrb[0].mxu0 %v2146
      %v2286 = vpop.f32.mrb[0].mxu0
      %v2287 = vadd.f32 0.0, %v2286
      %v2288 = vpop.f32.mrb[0].mxu0
      %v2289 = vpop.f32.mrb[0].mxu0
      %v2290 = vadd.f32 0.0, %v2289
      %v2291 = vpop.f32.mrb[0].mxu0
      %2292 = vmatprep.mubr.bf16.mxu0 0
      %2293 = vmatmul.mubr.bf16.gmra.mrb[0].mxu0 %v2149
      %v2294 = vpop.f32.mrb[0].mxu0
      %v2295 = vadd.f32 0.0, %v2294
      %v2296 = vpop.f32.mrb[0].mxu0
      %v2297 = vpop.f32.mrb[0].mxu0
      %v2298 = vadd.f32 0.0, %v2297
      %v2299 = vpop.f32.mrb[0].mxu0
      %2300 = vmatprep.mubr.bf16.mxu0 0
      %2301 = vmatmul.mubr.bf16.gmra.mrb[0].mxu0 %v2152
      %v2302 = vpop.f32.mrb[0].mxu0
      %v2303 = vadd.f32 0.0, %v2302
      %v2304 = vpop.f32.mrb[0].mxu0
      %v2305 = vpop.f32.mrb[0].mxu0
      %v2306 = vadd.f32 0.0, %v2305
      %v2307 = vpop.f32.mrb[0].mxu0
      %2308 = vmatprep.mubr.bf16.mxu0 0
      %2309 = vmatmul.mubr.bf16.gmra.mrb[0].mxu0 %v2155
      %v2310 = vpop.f32.mrb[0].mxu0
      %v2311 = vadd.f32 0.0, %v2310
      %v2312 = vpop.f32.mrb[0].mxu0
      %v2313 = vpop.f32.mrb[0].mxu0
      %v2314 = vadd.f32 0.0, %v2313
      %v2315 = vpop.f32.mrb[0].mxu0
      %2316 = vmatprep.mubr.bf16.mxu0 0
      %2317 = vmatmul.mubr.bf16.gmra.mrb[0].mxu0 %v2158
      %v2318 = vpop.f32.mrb[0].mxu0
      %v2319 = vadd.f32 0.0, %v2318
      %v2320 = vpop.f32.mrb[0].mxu0
      %v2321 = vpop.f32.mrb[0].mxu0
      %v2322 = vadd.f32 0.0, %v2321
      %v2323 = vpop.f32.mrb[0].mxu0
      %2324 = vdwg.mxu0
      %s2325 = sld [smem:[#allocation4]]
      %v2326 = vstv %s2325
      %v2327 = vmul.f32 %v2326, %v2199
      %v2328 = vmul.f32 %v2326, %v2202
      %v2329 = vmul.f32 %v2326, %v2207
      %v2330 = vmul.f32 %v2326, %v2210
      %v2331 = vmul.f32 %v2326, %v2215
      %v2332 = vmul.f32 %v2326, %v2218
      %v2333 = vmul.f32 %v2326, %v2223
      %v2334 = vmul.f32 %v2326, %v2226
      %v2335 = vmul.f32 %v2326, %v2231
      %v2336 = vmul.f32 %v2326, %v2234
      %v2337 = vmul.f32 %v2326, %v2239
      %v2338 = vmul.f32 %v2326, %v2242
      %v2339 = vmul.f32 %v2326, %v2247
      %v2340 = vmul.f32 %v2326, %v2250
      %v2341 = vmul.f32 %v2326, %v2255
      %v2342 = vmul.f32 %v2326, %v2258
      %v2343 = vmul.f32 %v2326, %v2263
      %v2344 = vmul.f32 %v2326, %v2266
      %v2345 = vmul.f32 %v2326, %v2271
      %v2346 = vmul.f32 %v2326, %v2274
      %v2347 = vmul.f32 %v2326, %v2279
      %v2348 = vmul.f32 %v2326, %v2282
      %v2349 = vmul.f32 %v2326, %v2287
      %v2350 = vmul.f32 %v2326, %v2290
      %v2351 = vmul.f32 %v2326, %v2295
      %v2352 = vmul.f32 %v2326, %v2298
      %v2353 = vmul.f32 %v2326, %v2303
      %v2354 = vmul.f32 %v2326, %v2306
      %v2355 = vmul.f32 %v2326, %v2311
      %v2356 = vmul.f32 %v2326, %v2314
      %v2357 = vmul.f32 %v2326, %v2319
      %v2358 = vmul.f32 %v2326, %v2322
      %v2359 = vadd.f32 %v2327, %v988
      %v2360 = vadd.f32 %v2328, %v989
      %v2361 = vadd.f32 %v2329, %v990
      %v2362 = vadd.f32 %v2330, %v991
      %v2363 = vadd.f32 %v2331, %v992
      %v2364 = vadd.f32 %v2332, %v993
      %v2365 = vadd.f32 %v2333, %v994
      %v2366 = vadd.f32 %v2334, %v995
      %v2367 = vadd.f32 %v2335, %v996
      %v2368 = vadd.f32 %v2336, %v997
      %v2369 = vadd.f32 %v2337, %v998
      %v2370 = vadd.f32 %v2338, %v999
      %v2371 = vadd.f32 %v2339, %v1000
      %v2372 = vadd.f32 %v2340, %v1001
      %v2373 = vadd.f32 %v2341, %v1002
      %v2374 = vadd.f32 %v2342, %v1003
      %v2375 = vadd.f32 %v2343, %v1004
      %v2376 = vadd.f32 %v2344, %v1005
      %v2377 = vadd.f32 %v2345, %v1006
      %v2378 = vadd.f32 %v2346, %v1007
      %v2379 = vadd.f32 %v2347, %v1008
      %v2380 = vadd.f32 %v2348, %v1009
      %v2381 = vadd.f32 %v2349, %v1010
      %v2382 = vadd.f32 %v2350, %v1011
      %v2383 = vadd.f32 %v2351, %v1012
      %v2384 = vadd.f32 %v2352, %v1013
      %v2385 = vadd.f32 %v2353, %v1014
      %v2386 = vadd.f32 %v2354, %v1015
      %v2387 = vadd.f32 %v2355, %v1016
      %v2388 = vadd.f32 %v2356, %v1017
      %v2389 = vadd.f32 %v2357, %v1018
      %v2390 = vadd.f32 %v2358, %v1019
      %2391 = vst.msk [vmem:[%s274] sm:$0xff] %vm1044, %v2359
      %2392 = vst.msk [vmem:[%s274 + $0x8] sm:$0xff] %vm1044, %v2360
      %2393 = vst.msk [vmem:[%s274 + $0x10] sm:$0xff] %vm1044, %v2361
      %2394 = vst.msk [vmem:[%s274 + $0x18] sm:$0xff] %vm1044, %v2362
      %2395 = vst.msk [vmem:[%s274 + $0x20] sm:$0xff] %vm1044, %v2363
      %2396 = vst.msk [vmem:[%s274 + $0x28] sm:$0xff] %vm1044, %v2364
      %2397 = vst.msk [vmem:[%s274 + $0x30] sm:$0xff] %vm1044, %v2365
      %2398 = vst.msk [vmem:[%s274 + $0x38] sm:$0xff] %vm1044, %v2366
      %2399 = vst.msk [vmem:[%s274 + $0x40] sm:$0xff] %vm1044, %v2367
      %2400 = vst.msk [vmem:[%s274 + $0x48] sm:$0xff] %vm1044, %v2368
      %2401 = vst.msk [vmem:[%s274 + $0x50] sm:$0xff] %vm1044, %v2369
      %2402 = vst.msk [vmem:[%s274 + $0x58] sm:$0xff] %vm1044, %v2370
      %2403 = vst.msk [vmem:[%s274 + $0x60] sm:$0xff] %vm1044, %v2371
      %2404 = vst.msk [vmem:[%s274 + $0x68] sm:$0xff] %vm1044, %v2372
      %2405 = vst.msk [vmem:[%s274 + $0x70] sm:$0xff] %vm1044, %v2373
      %2406 = vst.msk [vmem:[%s274 + $0x78] sm:$0xff] %vm1044, %v2374
      %2407 = vst.msk [vmem:[%s274 + $0x80] sm:$0xff] %vm1044, %v2375
      %2408 = vst.msk [vmem:[%s274 + $0x88] sm:$0xff] %vm1044, %v2376
      %2409 = vst.msk [vmem:[%s274 + $0x90] sm:$0xff] %vm1044, %v2377
      %2410 = vst.msk [vmem:[%s274 + $0x98] sm:$0xff] %vm1044, %v2378
      %2411 = vst.msk [vmem:[%s274 + $0xa0] sm:$0xff] %vm1044, %v2379
      %2412 = vst.msk [vmem:[%s274 + $0xa8] sm:$0xff] %vm1044, %v2380
      %2413 = vst.msk [vmem:[%s274 + $0xb0] sm:$0xff] %vm1044, %v2381
      %2414 = vst.msk [vmem:[%s274 + $0xb8] sm:$0xff] %vm1044, %v2382
      %2415 = vst.msk [vmem:[%s274 + $0xc0] sm:$0xff] %vm1044, %v2383
      %2416 = vst.msk [vmem:[%s274 + $0xc8] sm:$0xff] %vm1044, %v2384
      %2417 = vst.msk [vmem:[%s274 + $0xd0] sm:$0xff] %vm1044, %v2385
      %2418 = vst.msk [vmem:[%s274 + $0xd8] sm:$0xff] %vm1044, %v2386
      %2419 = vst.msk [vmem:[%s274 + $0xe0] sm:$0xff] %vm1044, %v2387
      %2420 = vst.msk [vmem:[%s274 + $0xe8] sm:$0xff] %vm1044, %v2388
      %2421 = vst.msk [vmem:[%s274 + $0xf0] sm:$0xff] %vm1044, %v2389
      %2422 = vst.msk [vmem:[%s274 + $0xf8] sm:$0xff] %vm1044, %v2390
      %s2423 = smul.u32 32, %s23
      %p2424 = scmp.lt.s32.totalorder %s22, 1
      %s2425 = scalar_select %p2424, %s22, 1
      %p2426 = scmp.lt.s32.totalorder %s2423, 31
      %s2427 = scalar_select %p2426, %s2423, 31
      %s2428 = smul.addr %s2425, 32
      %s2429 = sadd.s32 %s2427, %s2428
      %s2430 = smul.addr %s2429, 8
      %s2431 = scalar_lea.vmem %s6, %s2430
      // Predicated region
      $region49: #{tpu_custom_call.1} parent=43 // pred_check
        %p2432 = pneg %p181
      $region50: #{tpu_custom_call.1} parent=43 // pred_check_branch
        %2434 = sbr.rel (%p2432) target = $region52
      $region51: #{tpu_custom_call.1} parent=43 // pred_region
        %s2435 = smul.u32 32, %s23
      $region52: #{tpu_custom_call.1} parent=43 // pred_fallthru
        _
    $region44: #{tpu_custom_call.1} parent=5 // pred_fallthru
      _
    %p2436 = scmp.le.s32.totalorder 2, %s13
    // Predicated region
    $region53: #{tpu_custom_call.1} parent=5 // pred_check
      %p2437 = pneg %p2436
    $region54: #{tpu_custom_call.1} parent=5 // pred_check_branch
      %2439 = sbr.rel (%p2437) target = $region56
    $region55: #{tpu_custom_call.1} parent=5 // pred_region
      %s2440 = ssub.s32 %s13, 2
      // Predicated region
      $region57: #{tpu_custom_call.1} parent=55 // pred_check
        %p2441 = pneg %p187
      $region58: #{tpu_custom_call.1} parent=55 // pred_check_branch
        %2443 = sbr.rel (%p2441) target = $region60
      $region59: #{tpu_custom_call.1} parent=55 // pred_region
        %s2444 = smul.u32 32, %s25
        %p2445 = scmp.lt.s32.totalorder %s24, 1
        %s2446 = scalar_select %p2445, %s24, 1
        %p2447 = scmp.lt.s32.totalorder %s2444, 31
        %s2448 = scalar_select %p2447, %s2444, 31
        %s2449 = smul.addr %s2446, 32
        %s2450 = sadd.s32 %s2448, %s2449
        %s2451 = smul.addr %s2450, 8
        %s2452 = scalar_lea.vmem %s6, %s2451
      $region60: #{tpu_custom_call.1} parent=55 // pred_fallthru
        _
    $region56: #{tpu_custom_call.1} parent=5 // pred_fallthru
      _
  $region6: #{tpu_custom_call.1} parent=0 // loop_footer
    %s17 = sadd.s32 1, %s13
  $region7: #{tpu_custom_call.1} parent=0 // loop_footer_branch
    %12 = sbr.rel target = $region3
  $region8: #{tpu_custom_call.1} parent=0 // loop_exit
    _

</llo_original>
